<compile_context>
chip_gen: v5e
topology: v5e:2x2
jax: 0.10.0
libtpu: 0.0.40
codegen_flags: <defaults>
</compile_context>

<pallas_src>
import functools
import math

import jax
import jax.numpy as jnp
from jax.experimental import pallas as pl
from jax.experimental.pallas import tpu as pltpu


def _layernorm(x, gamma, beta, eps=1e-5):
    mean = jnp.mean(x, axis=-1, keepdims=True)
    xc = x - mean
    var = jnp.mean(xc * xc, axis=-1, keepdims=True)
    return xc * jax.lax.rsqrt(var + eps) * gamma + beta


def _shift_left(x):
    """out[..., l] = x[..., l + 1]; zero at the right edge."""
    zero = jnp.zeros(x.shape[:-1] + (1,), x.dtype)
    return jnp.concatenate([x[..., 1:], zero], axis=-1)


def _shift_right(x):
    """out[..., l] = x[..., l - 1]; zero at the left edge."""
    zero = jnp.zeros(x.shape[:-1] + (1,), x.dtype)
    return jnp.concatenate([zero, x[..., :-1]], axis=-1)


def _temporal_projection_kernel(
        x_ref, wp_ref, bp_ref, w1_ref, b1_ref, w2_ref, b2_ref,
        g_ref, beta_ref, win_ref, bin_ref, wo_ref, bo_ref,
        o_ref, *, tb, nhead, dh, d_model, pred_len):
    f32 = jnp.float32
    scale = 1.0 / math.sqrt(dh)

    # ---- 1. projection: Linear(fusion_dim, d_model), batched over TB rows ----
    x_blk = x_ref[0]                                                    # (TB, Fd)
    y = jnp.dot(x_blk, wp_ref[...], preferred_element_type=f32) + bp_ref[...]

    # neighbour taps shared by conv1 (lane shifts, zero padded at the edges)
    y_m1 = _shift_right(y)                                              # y[l-1]
    y_p1 = _shift_left(y)                                               # y[l+1]

    # hoisted weight views (outside the batch loop)
    w1 = w1_ref[...]                                                    # (D, 3)
    w1_0, w1_1, w1_2 = w1[:, 0:1], w1[:, 1:2], w1[:, 2:3]               # (D, 1)
    b1 = b1_ref[...]                                                    # (D, 1)
    w2_0, w2_1, w2_2 = w2_ref[0], w2_ref[1], w2_ref[2]                  # (P, D)
    b2 = b2_ref[...]                                                    # (P, 1)
    gamma, beta = g_ref[...], beta_ref[...]                             # (1, D)
    w_in_t, b_in = win_ref[...], bin_ref[...]                           # (D, 3D), (1, 3D)
    wo_t, bo = wo_ref[...], bo_ref[...]                                 # (D, D), (1, D)

    rows = []
    for b in range(tb):
        # ---- 2. Conv1d(1, D, 3, pad=1) + ReLU: three VPU broadcast FMAs ----
        h1 = (w1_0 * y_m1[b:b + 1, :] + w1_1 * y[b:b + 1, :]
              + w1_2 * y_p1[b:b + 1, :] + b1)                           # (D, D)
        h1 = jnp.maximum(h1, 0.0)

        # ---- 3. Conv1d(D, P, 3, pad=1): accumulated matmuls, taps on outputs ----
        m0 = jnp.dot(w2_0, h1, preferred_element_type=f32)
        m1 = jnp.dot(w2_1, h1, preferred_element_type=f32)
        m2 = jnp.dot(w2_2, h1, preferred_element_type=f32)
        h2 = _shift_right(m0) + m1 + _shift_left(m2) + b2               # (P, D)

        # ---- 4. LayerNorm(d_model) ----
        a_in = _layernorm(h2, gamma, beta)                              # (S=P, E=D)

        # ---- 5. MultiheadAttention over the pred_len axis ----
        qkv = jnp.dot(a_in, w_in_t, preferred_element_type=f32) + b_in  # (S, 3D)
        q = qkv[:, 0:d_model] * scale
        k = qkv[:, d_model:2 * d_model]
        v = qkv[:, 2 * d_model:3 * d_model]
        qh = jnp.stack([q[:, h * dh:(h + 1) * dh] for h in range(nhead)], axis=0)
        kh = jnp.stack([k[:, h * dh:(h + 1) * dh] for h in range(nhead)], axis=0)
        vh = jnp.stack([v[:, h * dh:(h + 1) * dh] for h in range(nhead)], axis=0)
        s = jnp.einsum('hsd,htd->hst', qh, kh, preferred_element_type=f32)   # (H,S,S)
        s = s - jnp.max(s, axis=-1, keepdims=True)
        e = jnp.exp(s)
        probs = e * pl.reciprocal(jnp.sum(e, axis=-1, keepdims=True), approx=True)
        ctx = jnp.einsum('hst,htd->hsd', probs, vh, preferred_element_type=f32)
        ctx2d = jnp.concatenate([ctx[h] for h in range(nhead)], axis=-1)     # (S, D)
        attn = jnp.dot(ctx2d, wo_t, preferred_element_type=f32) + bo         # (S, D)

        # ---- 6. final LayerNorm (same affine params) + lane-dense flatten ----
        ob = _layernorm(attn, gamma, beta)                              # (P, D)
        rows.append(jnp.concatenate(
            [ob[t:t + 1, :] for t in range(pred_len)], axis=-1))        # (1, P*D)

    o_ref[0] = jnp.concatenate(rows, axis=0).astype(o_ref.dtype)        # (TB, P*D)


_PARAM_ORDER = ("wp_t", "bp", "w1", "b1", "w2", "b2",
                "ln_g", "ln_b", "w_in_t", "b_in", "wo_t", "bo")


def prepare_params(params):
    """One-time weight re-layouts (hoisted out of the per-call forward)."""
    d_model = params["proj_w"].shape[0]
    pred_len = params["conv2_w"].shape[0]
    return dict(
        wp_t=params["proj_w"].T,                                        # (Fd, D)
        bp=params["proj_b"].reshape(1, d_model),
        w1=params["conv1_w"].reshape(d_model, 3),                       # (D, K)
        b1=params["conv1_b"].reshape(d_model, 1),
        w2=jnp.transpose(params["conv2_w"], (2, 0, 1)),                 # (K, P, D)
        b2=params["conv2_b"].reshape(pred_len, 1),
        ln_g=params["norm_g"].reshape(1, d_model),
        ln_b=params["norm_b"].reshape(1, d_model),
        w_in_t=params["attn_in_w"].T,                                   # (D, 3D)
        b_in=params["attn_in_b"].reshape(1, 3 * d_model),
        wo_t=params["attn_out_w"].T,                                    # (D, D)
        bo=params["attn_out_b"].reshape(1, d_model),
    )


def _pick_block_b(batch, block_b):
    tb = max(1, min(block_b, batch))
    if batch >= 2:                      # keep >= 2 grid steps (v7x: 2 TensorCores)
        tb = min(tb, max(1, batch // 2))
    while batch % tb:                   # block must divide the batch
        tb -= 1
    return tb


def temporal_projection(x, prepped, *, nhead, block_b=8):
    """x: (B, fusion_dim) -> (B, pred_len, d_model). Single fused pallas_call."""
    batch, fusion_dim = x.shape
    d_model = prepped["wp_t"].shape[1]
    pred_len = prepped["w2"].shape[1]
    dh = d_model // nhead

    tb = _pick_block_b(batch, block_b)
    nb = batch // tb
    x3 = x.reshape(nb, tb, fusion_dim)               # free (contiguous) reshape

    def rep(a):
        nd = a.ndim
        return pl.BlockSpec(a.shape, lambda i, _nd=nd: (0,) * _nd)

    kernel = functools.partial(
        _temporal_projection_kernel,
        tb=tb, nhead=nhead, dh=dh, d_model=d_model, pred_len=pred_len)

    out_flat = pl.pallas_call(
        kernel,
        out_shape=jax.ShapeDtypeStruct((nb, tb, pred_len * d_model), x.dtype),
        grid=(nb,),
        in_specs=[pl.BlockSpec((1, tb, fusion_dim), lambda i: (i, 0, 0))]
                 + [rep(prepped[name]) for name in _PARAM_ORDER],
        out_specs=pl.BlockSpec((1, tb, pred_len * d_model), lambda i: (i, 0, 0)),
        compiler_params=pltpu.CompilerParams(
            dimension_semantics=("parallel",),
            vmem_limit_bytes=32 * 1024 * 1024),
    )(x3, *(prepped[name] for name in _PARAM_ORDER))

    # lane-dense (nb, tb, P*D) slab -> (B, pred_len, d_model); contiguous => free
    return out_flat.reshape(batch, pred_len, d_model)


def init_params(key, fusion_dim, d_model, pred_len):
    ks = iter(jax.random.split(key, 16))

    def nrm(shape, s=0.1):
        return jax.random.normal(next(ks), shape, jnp.float32) * s

    return dict(
        proj_w=nrm((d_model, fusion_dim)),
        proj_b=nrm((d_model,)),
        conv1_w=nrm((d_model, 1, 3)),
        conv1_b=nrm((d_model,)),
        conv2_w=nrm((pred_len, d_model, 3)),
        conv2_b=nrm((pred_len,)),
        attn_in_w=nrm((3 * d_model, d_model)),
        attn_in_b=nrm((3 * d_model,)),
        attn_out_w=nrm((d_model, d_model)),
        attn_out_b=nrm((d_model,)),
        norm_g=1.0 + nrm((d_model,)),
        norm_b=nrm((d_model,)),
    )


if __name__ == "__main__":
    key = jax.random.PRNGKey(0)
    k_x, k_p = jax.random.split(key)
    B, FUSION_DIM, D_MODEL, PRED_LEN, NHEAD = 4, 16, 32, 8, 8

    x = jax.random.normal(k_x, (B, FUSION_DIM), jnp.float32)
    params = init_params(k_p, FUSION_DIM, D_MODEL, PRED_LEN)
    prepped = prepare_params(params)          # one-time weight re-layouts

    fwd = jax.jit(functools.partial(temporal_projection, nhead=NHEAD))
    out = jax.block_until_ready(fwd(x, prepped))

    assert out.shape == (B, PRED_LEN, D_MODEL), out.shape
    assert bool(jnp.all(jnp.isfinite(out)))
    print("KERNEL_OK")
</pallas_src>

<mosaic_0001>
module attributes {stable_mosaic.version = 11 : i64} {
  func.func @_temporal_projection_kernel(%arg0: i32, %arg1: memref<1x2x16xf32, #tpu.memory_space<vmem>>, %arg2: memref<16x32xf32, #tpu.memory_space<vmem>>, %arg3: memref<1x32xf32, #tpu.memory_space<vmem>>, %arg4: memref<32x3xf32, #tpu.memory_space<vmem>>, %arg5: memref<32x1xf32, #tpu.memory_space<vmem>>, %arg6: memref<3x8x32xf32, #tpu.memory_space<vmem>>, %arg7: memref<8x1xf32, #tpu.memory_space<vmem>>, %arg8: memref<1x32xf32, #tpu.memory_space<vmem>>, %arg9: memref<1x32xf32, #tpu.memory_space<vmem>>, %arg10: memref<32x96xf32, #tpu.memory_space<vmem>>, %arg11: memref<1x96xf32, #tpu.memory_space<vmem>>, %arg12: memref<32x32xf32, #tpu.memory_space<vmem>>, %arg13: memref<1x32xf32, #tpu.memory_space<vmem>>, %arg14: memref<1x2x256xf32, #tpu.memory_space<vmem>>) attributes {dimension_semantics = [#tpu.dimension_semantics<parallel>], iteration_bounds = array<i64: 2>, scalar_prefetch = 0 : i64, scratch_operands = 0 : i64, tpu.core_type = #tpu.core_type<tc>, window_params = [{transform_indices = @transform_0, window_bounds = array<i64: 1, 2, 16>}, {pipeline_mode = #tpu.pipeline_mode<synchronous>, transform_indices = @transform_1, window_bounds = array<i64: 16, 32>}, {pipeline_mode = #tpu.pipeline_mode<synchronous>, transform_indices = @transform_2, window_bounds = array<i64: 1, 32>}, {pipeline_mode = #tpu.pipeline_mode<synchronous>, transform_indices = @transform_3, window_bounds = array<i64: 32, 3>}, {pipeline_mode = #tpu.pipeline_mode<synchronous>, transform_indices = @transform_4, window_bounds = array<i64: 32, 1>}, {pipeline_mode = #tpu.pipeline_mode<synchronous>, transform_indices = @transform_5, window_bounds = array<i64: 3, 8, 32>}, {pipeline_mode = #tpu.pipeline_mode<synchronous>, transform_indices = @transform_6, window_bounds = array<i64: 8, 1>}, {pipeline_mode = #tpu.pipeline_mode<synchronous>, transform_indices = @transform_7, window_bounds = array<i64: 1, 32>}, {pipeline_mode = #tpu.pipeline_mode<synchronous>, transform_indices = @transform_8, window_bounds = array<i64: 1, 32>}, {pipeline_mode = #tpu.pipeline_mode<synchronous>, transform_indices = @transform_9, window_bounds = array<i64: 32, 96>}, {pipeline_mode = #tpu.pipeline_mode<synchronous>, transform_indices = @transform_10, window_bounds = array<i64: 1, 96>}, {pipeline_mode = #tpu.pipeline_mode<synchronous>, transform_indices = @transform_11, window_bounds = array<i64: 32, 32>}, {pipeline_mode = #tpu.pipeline_mode<synchronous>, transform_indices = @transform_12, window_bounds = array<i64: 1, 32>}, {transform_indices = @transform_13, window_bounds = array<i64: 1, 2, 256>}]} {
    %c0 = arith.constant 0 : index
    %c0_0 = arith.constant 0 : index
    %c0_1 = arith.constant 0 : index
    %0 = vector.load %arg1[%c0, %c0_0, %c0_1] : memref<1x2x16xf32, #tpu.memory_space<vmem>>, vector<1x2x16xf32>
    %1 = vector.shape_cast %0 : vector<1x2x16xf32> to vector<2x16xf32>
    %c0_2 = arith.constant 0 : index
    %c0_3 = arith.constant 0 : index
    %2 = vector.load %arg2[%c0_2, %c0_3] : memref<16x32xf32, #tpu.memory_space<vmem>>, vector<16x32xf32>
    %cst = arith.constant dense<0.000000e+00> : vector<2x32xf32>
    %3 = tpu.matmul %1, %2, %cst {dimension_numbers = #tpu.dot_dimension_numbers<[1], [0], [0], [1], [0, 0, 1, 1], [], []>} : vector<2x16xf32>, vector<16x32xf32>, vector<2x32xf32> -> vector<2x32xf32>
    %c0_4 = arith.constant 0 : index
    %c0_5 = arith.constant 0 : index
    %4 = vector.load %arg3[%c0_4, %c0_5] : memref<1x32xf32, #tpu.memory_space<vmem>>, vector<1x32xf32>
    %5 = vector.broadcast %4 : vector<1x32xf32> to vector<2x32xf32>
    %6 = arith.addf %3, %5 : vector<2x32xf32>
    %cst_6 = arith.constant 0.000000e+00 : f32
    %7 = vector.broadcast %cst_6 : f32 to vector<2x1xf32>
    %8 = vector.extract_strided_slice %6 {offsets = [0, 0], sizes = [2, 31], strides = [1, 1]} : vector<2x32xf32> to vector<2x31xf32>
    %9 = tpu.concatenate %7, %8 in 1 : vector<2x1xf32>, vector<2x31xf32> -> vector<2x32xf32>
    %cst_7 = arith.constant 0.000000e+00 : f32
    %10 = vector.broadcast %cst_7 : f32 to vector<2x1xf32>
    %11 = vector.extract_strided_slice %6 {offsets = [0, 1], sizes = [2, 31], strides = [1, 1]} : vector<2x32xf32> to vector<2x31xf32>
    %12 = tpu.concatenate %11, %10 in 1 : vector<2x31xf32>, vector<2x1xf32> -> vector<2x32xf32>
    %c0_8 = arith.constant 0 : index
    %c0_9 = arith.constant 0 : index
    %13 = vector.load %arg4[%c0_8, %c0_9] : memref<32x3xf32, #tpu.memory_space<vmem>>, vector<32x3xf32>
    %14 = vector.extract_strided_slice %13 {offsets = [0, 0], sizes = [32, 1], strides = [1, 1]} : vector<32x3xf32> to vector<32x1xf32>
    %15 = vector.extract_strided_slice %13 {offsets = [0, 1], sizes = [32, 1], strides = [1, 1]} : vector<32x3xf32> to vector<32x1xf32>
    %16 = vector.extract_strided_slice %13 {offsets = [0, 2], sizes = [32, 1], strides = [1, 1]} : vector<32x3xf32> to vector<32x1xf32>
    %c0_10 = arith.constant 0 : index
    %c0_11 = arith.constant 0 : index
    %17 = vector.load %arg5[%c0_10, %c0_11] : memref<32x1xf32, #tpu.memory_space<vmem>>, vector<32x1xf32>
    %c0_12 = arith.constant 0 : index
    %c0_13 = arith.constant 0 : index
    %c0_14 = arith.constant 0 : index
    %18 = vector.load %arg6[%c0_12, %c0_13, %c0_14] : memref<3x8x32xf32, #tpu.memory_space<vmem>>, vector<1x8x32xf32>
    %19 = vector.shape_cast %18 : vector<1x8x32xf32> to vector<8x32xf32>
    %c1 = arith.constant 1 : index
    %c0_15 = arith.constant 0 : index
    %c0_16 = arith.constant 0 : index
    %20 = vector.load %arg6[%c1, %c0_15, %c0_16] : memref<3x8x32xf32, #tpu.memory_space<vmem>>, vector<1x8x32xf32>
    %21 = vector.shape_cast %20 : vector<1x8x32xf32> to vector<8x32xf32>
    %c2 = arith.constant 2 : index
    %c0_17 = arith.constant 0 : index
    %c0_18 = arith.constant 0 : index
    %22 = vector.load %arg6[%c2, %c0_17, %c0_18] : memref<3x8x32xf32, #tpu.memory_space<vmem>>, vector<1x8x32xf32>
    %23 = vector.shape_cast %22 : vector<1x8x32xf32> to vector<8x32xf32>
    %c0_19 = arith.constant 0 : index
    %c0_20 = arith.constant 0 : index
    %24 = vector.load %arg7[%c0_19, %c0_20] : memref<8x1xf32, #tpu.memory_space<vmem>>, vector<8x1xf32>
    %c0_21 = arith.constant 0 : index
    %c0_22 = arith.constant 0 : index
    %25 = vector.load %arg8[%c0_21, %c0_22] : memref<1x32xf32, #tpu.memory_space<vmem>>, vector<1x32xf32>
    %c0_23 = arith.constant 0 : index
    %c0_24 = arith.constant 0 : index
    %26 = vector.load %arg9[%c0_23, %c0_24] : memref<1x32xf32, #tpu.memory_space<vmem>>, vector<1x32xf32>
    %c0_25 = arith.constant 0 : index
    %c0_26 = arith.constant 0 : index
    %27 = vector.load %arg10[%c0_25, %c0_26] : memref<32x96xf32, #tpu.memory_space<vmem>>, vector<32x96xf32>
    %c0_27 = arith.constant 0 : index
    %c0_28 = arith.constant 0 : index
    %28 = vector.load %arg11[%c0_27, %c0_28] : memref<1x96xf32, #tpu.memory_space<vmem>>, vector<1x96xf32>
    %c0_29 = arith.constant 0 : index
    %c0_30 = arith.constant 0 : index
    %29 = vector.load %arg12[%c0_29, %c0_30] : memref<32x32xf32, #tpu.memory_space<vmem>>, vector<32x32xf32>
    %c0_31 = arith.constant 0 : index
    %c0_32 = arith.constant 0 : index
    %30 = vector.load %arg13[%c0_31, %c0_32] : memref<1x32xf32, #tpu.memory_space<vmem>>, vector<1x32xf32>
    %31 = vector.extract_strided_slice %9 {offsets = [0, 0], sizes = [1, 32], strides = [1, 1]} : vector<2x32xf32> to vector<1x32xf32>
    %32 = vector.broadcast %14 : vector<32x1xf32> to vector<32x32xf32>
    %33 = vector.broadcast %31 : vector<1x32xf32> to vector<32x32xf32>
    %34 = arith.mulf %32, %33 : vector<32x32xf32>
    %35 = vector.extract_strided_slice %6 {offsets = [0, 0], sizes = [1, 32], strides = [1, 1]} : vector<2x32xf32> to vector<1x32xf32>
    %36 = vector.broadcast %15 : vector<32x1xf32> to vector<32x32xf32>
    %37 = vector.broadcast %35 : vector<1x32xf32> to vector<32x32xf32>
    %38 = arith.mulf %36, %37 : vector<32x32xf32>
    %39 = arith.addf %34, %38 : vector<32x32xf32>
    %40 = vector.extract_strided_slice %12 {offsets = [0, 0], sizes = [1, 32], strides = [1, 1]} : vector<2x32xf32> to vector<1x32xf32>
    %41 = vector.broadcast %16 : vector<32x1xf32> to vector<32x32xf32>
    %42 = vector.broadcast %40 : vector<1x32xf32> to vector<32x32xf32>
    %43 = arith.mulf %41, %42 : vector<32x32xf32>
    %44 = arith.addf %39, %43 : vector<32x32xf32>
    %45 = vector.broadcast %17 : vector<32x1xf32> to vector<32x32xf32>
    %46 = arith.addf %44, %45 : vector<32x32xf32>
    %cst_33 = arith.constant 0.000000e+00 : f32
    %47 = vector.broadcast %cst_33 : f32 to vector<32x32xf32>
    %48 = arith.maximumf %46, %47 : vector<32x32xf32>
    %cst_34 = arith.constant dense<0.000000e+00> : vector<8x32xf32>
    %49 = tpu.matmul %19, %48, %cst_34 {dimension_numbers = #tpu.dot_dimension_numbers<[1], [0], [0], [1], [0, 0, 1, 1], [], []>} : vector<8x32xf32>, vector<32x32xf32>, vector<8x32xf32> -> vector<8x32xf32>
    %cst_35 = arith.constant dense<0.000000e+00> : vector<8x32xf32>
    %50 = tpu.matmul %21, %48, %cst_35 {dimension_numbers = #tpu.dot_dimension_numbers<[1], [0], [0], [1], [0, 0, 1, 1], [], []>} : vector<8x32xf32>, vector<32x32xf32>, vector<8x32xf32> -> vector<8x32xf32>
    %cst_36 = arith.constant dense<0.000000e+00> : vector<8x32xf32>
    %51 = tpu.matmul %23, %48, %cst_36 {dimension_numbers = #tpu.dot_dimension_numbers<[1], [0], [0], [1], [0, 0, 1, 1], [], []>} : vector<8x32xf32>, vector<32x32xf32>, vector<8x32xf32> -> vector<8x32xf32>
    %cst_37 = arith.constant 0.000000e+00 : f32
    %52 = vector.broadcast %cst_37 : f32 to vector<8x1xf32>
    %53 = vector.extract_strided_slice %49 {offsets = [0, 0], sizes = [8, 31], strides = [1, 1]} : vector<8x32xf32> to vector<8x31xf32>
    %54 = tpu.concatenate %52, %53 in 1 : vector<8x1xf32>, vector<8x31xf32> -> vector<8x32xf32>
    %55 = arith.addf %54, %50 : vector<8x32xf32>
    %cst_38 = arith.constant 0.000000e+00 : f32
    %56 = vector.broadcast %cst_38 : f32 to vector<8x1xf32>
    %57 = vector.extract_strided_slice %51 {offsets = [0, 1], sizes = [8, 31], strides = [1, 1]} : vector<8x32xf32> to vector<8x31xf32>
    %58 = tpu.concatenate %57, %56 in 1 : vector<8x31xf32>, vector<8x1xf32> -> vector<8x32xf32>
    %59 = arith.addf %55, %58 : vector<8x32xf32>
    %60 = vector.broadcast %24 : vector<8x1xf32> to vector<8x32xf32>
    %61 = arith.addf %59, %60 : vector<8x32xf32>
    %cst_39 = arith.constant dense<0.000000e+00> : vector<8xf32>
    %62 = vector.multi_reduction <add>, %61, %cst_39 [1] : vector<8x32xf32> to vector<8xf32>
    %63 = vector.shape_cast %62 : vector<8xf32> to vector<8x1xf32>
    %cst_40 = arith.constant 3.200000e+01 : f32
    %64 = vector.broadcast %cst_40 : f32 to vector<8x1xf32>
    %65 = arith.divf %63, %64 : vector<8x1xf32>
    %66 = vector.broadcast %65 : vector<8x1xf32> to vector<8x32xf32>
    %67 = arith.subf %61, %66 : vector<8x32xf32>
    %68 = arith.mulf %67, %67 : vector<8x32xf32>
    %cst_41 = arith.constant dense<0.000000e+00> : vector<8xf32>
    %69 = vector.multi_reduction <add>, %68, %cst_41 [1] : vector<8x32xf32> to vector<8xf32>
    %70 = vector.shape_cast %69 : vector<8xf32> to vector<8x1xf32>
    %cst_42 = arith.constant 3.200000e+01 : f32
    %71 = vector.broadcast %cst_42 : f32 to vector<8x1xf32>
    %72 = arith.divf %70, %71 : vector<8x1xf32>
    %cst_43 = arith.constant 9.99999974E-6 : f32
    %73 = vector.broadcast %cst_43 : f32 to vector<8x1xf32>
    %74 = arith.addf %72, %73 : vector<8x1xf32>
    %75 = math.rsqrt %74 : vector<8x1xf32>
    %76 = vector.broadcast %75 : vector<8x1xf32> to vector<8x32xf32>
    %77 = arith.mulf %67, %76 : vector<8x32xf32>
    %78 = vector.broadcast %25 : vector<1x32xf32> to vector<8x32xf32>
    %79 = arith.mulf %77, %78 : vector<8x32xf32>
    %80 = vector.broadcast %26 : vector<1x32xf32> to vector<8x32xf32>
    %81 = arith.addf %79, %80 : vector<8x32xf32>
    %cst_44 = arith.constant dense<0.000000e+00> : vector<8x96xf32>
    %82 = tpu.matmul %81, %27, %cst_44 {dimension_numbers = #tpu.dot_dimension_numbers<[1], [0], [0], [1], [0, 0, 1, 1], [], []>} : vector<8x32xf32>, vector<32x96xf32>, vector<8x96xf32> -> vector<8x96xf32>
    %83 = vector.broadcast %28 : vector<1x96xf32> to vector<8x96xf32>
    %84 = arith.addf %82, %83 : vector<8x96xf32>
    %85 = vector.extract_strided_slice %84 {offsets = [0, 0], sizes = [8, 32], strides = [1, 1]} : vector<8x96xf32> to vector<8x32xf32>
    %cst_45 = arith.constant 5.000000e-01 : f32
    %86 = vector.broadcast %cst_45 : f32 to vector<8x32xf32>
    %87 = arith.mulf %85, %86 : vector<8x32xf32>
    %88 = vector.extract_strided_slice %84 {offsets = [0, 32], sizes = [8, 32], strides = [1, 1]} : vector<8x96xf32> to vector<8x32xf32>
    %89 = vector.extract_strided_slice %84 {offsets = [0, 64], sizes = [8, 32], strides = [1, 1]} : vector<8x96xf32> to vector<8x32xf32>
    %90 = vector.extract_strided_slice %87 {offsets = [0, 0], sizes = [8, 4], strides = [1, 1]} : vector<8x32xf32> to vector<8x4xf32>
    %91 = vector.extract_strided_slice %87 {offsets = [0, 4], sizes = [8, 4], strides = [1, 1]} : vector<8x32xf32> to vector<8x4xf32>
    %92 = vector.extract_strided_slice %87 {offsets = [0, 8], sizes = [8, 4], strides = [1, 1]} : vector<8x32xf32> to vector<8x4xf32>
    %93 = vector.extract_strided_slice %87 {offsets = [0, 12], sizes = [8, 4], strides = [1, 1]} : vector<8x32xf32> to vector<8x4xf32>
    %94 = vector.extract_strided_slice %87 {offsets = [0, 16], sizes = [8, 4], strides = [1, 1]} : vector<8x32xf32> to vector<8x4xf32>
    %95 = vector.extract_strided_slice %87 {offsets = [0, 20], sizes = [8, 4], strides = [1, 1]} : vector<8x32xf32> to vector<8x4xf32>
    %96 = vector.extract_strided_slice %87 {offsets = [0, 24], sizes = [8, 4], strides = [1, 1]} : vector<8x32xf32> to vector<8x4xf32>
    %97 = vector.extract_strided_slice %87 {offsets = [0, 28], sizes = [8, 4], strides = [1, 1]} : vector<8x32xf32> to vector<8x4xf32>
    %98 = vector.shape_cast %90 : vector<8x4xf32> to vector<1x8x4xf32>
    %99 = vector.shape_cast %91 : vector<8x4xf32> to vector<1x8x4xf32>
    %100 = vector.shape_cast %92 : vector<8x4xf32> to vector<1x8x4xf32>
    %101 = vector.shape_cast %93 : vector<8x4xf32> to vector<1x8x4xf32>
    %102 = vector.shape_cast %94 : vector<8x4xf32> to vector<1x8x4xf32>
    %103 = vector.shape_cast %95 : vector<8x4xf32> to vector<1x8x4xf32>
    %104 = vector.shape_cast %96 : vector<8x4xf32> to vector<1x8x4xf32>
    %105 = vector.shape_cast %97 : vector<8x4xf32> to vector<1x8x4xf32>
    %106 = tpu.concatenate %98, %99, %100, %101, %102, %103, %104, %105 in 0 : vector<1x8x4xf32>, vector<1x8x4xf32>, vector<1x8x4xf32>, vector<1x8x4xf32>, vector<1x8x4xf32>, vector<1x8x4xf32>, vector<1x8x4xf32>, vector<1x8x4xf32> -> vector<8x8x4xf32>
    %107 = vector.extract_strided_slice %88 {offsets = [0, 0], sizes = [8, 4], strides = [1, 1]} : vector<8x32xf32> to vector<8x4xf32>
    %108 = vector.extract_strided_slice %88 {offsets = [0, 4], sizes = [8, 4], strides = [1, 1]} : vector<8x32xf32> to vector<8x4xf32>
    %109 = vector.extract_strided_slice %88 {offsets = [0, 8], sizes = [8, 4], strides = [1, 1]} : vector<8x32xf32> to vector<8x4xf32>
    %110 = vector.extract_strided_slice %88 {offsets = [0, 12], sizes = [8, 4], strides = [1, 1]} : vector<8x32xf32> to vector<8x4xf32>
    %111 = vector.extract_strided_slice %88 {offsets = [0, 16], sizes = [8, 4], strides = [1, 1]} : vector<8x32xf32> to vector<8x4xf32>
    %112 = vector.extract_strided_slice %88 {offsets = [0, 20], sizes = [8, 4], strides = [1, 1]} : vector<8x32xf32> to vector<8x4xf32>
    %113 = vector.extract_strided_slice %88 {offsets = [0, 24], sizes = [8, 4], strides = [1, 1]} : vector<8x32xf32> to vector<8x4xf32>
    %114 = vector.extract_strided_slice %88 {offsets = [0, 28], sizes = [8, 4], strides = [1, 1]} : vector<8x32xf32> to vector<8x4xf32>
    %115 = vector.shape_cast %107 : vector<8x4xf32> to vector<1x8x4xf32>
    %116 = vector.shape_cast %108 : vector<8x4xf32> to vector<1x8x4xf32>
    %117 = vector.shape_cast %109 : vector<8x4xf32> to vector<1x8x4xf32>
    %118 = vector.shape_cast %110 : vector<8x4xf32> to vector<1x8x4xf32>
    %119 = vector.shape_cast %111 : vector<8x4xf32> to vector<1x8x4xf32>
    %120 = vector.shape_cast %112 : vector<8x4xf32> to vector<1x8x4xf32>
    %121 = vector.shape_cast %113 : vector<8x4xf32> to vector<1x8x4xf32>
    %122 = vector.shape_cast %114 : vector<8x4xf32> to vector<1x8x4xf32>
    %123 = tpu.concatenate %115, %116, %117, %118, %119, %120, %121, %122 in 0 : vector<1x8x4xf32>, vector<1x8x4xf32>, vector<1x8x4xf32>, vector<1x8x4xf32>, vector<1x8x4xf32>, vector<1x8x4xf32>, vector<1x8x4xf32>, vector<1x8x4xf32> -> vector<8x8x4xf32>
    %124 = vector.extract_strided_slice %89 {offsets = [0, 0], sizes = [8, 4], strides = [1, 1]} : vector<8x32xf32> to vector<8x4xf32>
    %125 = vector.extract_strided_slice %89 {offsets = [0, 4], sizes = [8, 4], strides = [1, 1]} : vector<8x32xf32> to vector<8x4xf32>
    %126 = vector.extract_strided_slice %89 {offsets = [0, 8], sizes = [8, 4], strides = [1, 1]} : vector<8x32xf32> to vector<8x4xf32>
    %127 = vector.extract_strided_slice %89 {offsets = [0, 12], sizes = [8, 4], strides = [1, 1]} : vector<8x32xf32> to vector<8x4xf32>
    %128 = vector.extract_strided_slice %89 {offsets = [0, 16], sizes = [8, 4], strides = [1, 1]} : vector<8x32xf32> to vector<8x4xf32>
    %129 = vector.extract_strided_slice %89 {offsets = [0, 20], sizes = [8, 4], strides = [1, 1]} : vector<8x32xf32> to vector<8x4xf32>
    %130 = vector.extract_strided_slice %89 {offsets = [0, 24], sizes = [8, 4], strides = [1, 1]} : vector<8x32xf32> to vector<8x4xf32>
    %131 = vector.extract_strided_slice %89 {offsets = [0, 28], sizes = [8, 4], strides = [1, 1]} : vector<8x32xf32> to vector<8x4xf32>
    %132 = vector.shape_cast %124 : vector<8x4xf32> to vector<1x8x4xf32>
    %133 = vector.shape_cast %125 : vector<8x4xf32> to vector<1x8x4xf32>
    %134 = vector.shape_cast %126 : vector<8x4xf32> to vector<1x8x4xf32>
    %135 = vector.shape_cast %127 : vector<8x4xf32> to vector<1x8x4xf32>
    %136 = vector.shape_cast %128 : vector<8x4xf32> to vector<1x8x4xf32>
    %137 = vector.shape_cast %129 : vector<8x4xf32> to vector<1x8x4xf32>
    %138 = vector.shape_cast %130 : vector<8x4xf32> to vector<1x8x4xf32>
    %139 = vector.shape_cast %131 : vector<8x4xf32> to vector<1x8x4xf32>
    %140 = tpu.concatenate %132, %133, %134, %135, %136, %137, %138, %139 in 0 : vector<1x8x4xf32>, vector<1x8x4xf32>, vector<1x8x4xf32>, vector<1x8x4xf32>, vector<1x8x4xf32>, vector<1x8x4xf32>, vector<1x8x4xf32>, vector<1x8x4xf32> -> vector<8x8x4xf32>
    "tpu.trace_start"() <{level = 10 : i32, message = "hsd,htd->hst"}> : () -> ()
    %cst_46 = arith.constant dense<0.000000e+00> : vector<8x8x8xf32>
    %141 = tpu.matmul %106, %123, %cst_46 {dimension_numbers = #tpu.dot_dimension_numbers<[2], [2], [1], [1], [0, 0, 0, 1, 1, 1], [0], [0]>} : vector<8x8x4xf32>, vector<8x8x4xf32>, vector<8x8x8xf32> -> vector<8x8x8xf32>
    "tpu.trace_stop"() : () -> ()
    %cst_47 = arith.constant dense<0xFF800000> : vector<8x8xf32>
    %142 = vector.multi_reduction <maximumf>, %141, %cst_47 [2] : vector<8x8x8xf32> to vector<8x8xf32>
    %143 = vector.shape_cast %142 : vector<8x8xf32> to vector<8x8x1xf32>
    %144 = vector.broadcast %143 : vector<8x8x1xf32> to vector<8x8x8xf32>
    %145 = arith.subf %141, %144 : vector<8x8x8xf32>
    %146 = math.exp %145 : vector<8x8x8xf32>
    %cst_48 = arith.constant dense<0.000000e+00> : vector<8x8xf32>
    %147 = vector.multi_reduction <add>, %146, %cst_48 [2] : vector<8x8x8xf32> to vector<8x8xf32>
    %148 = vector.shape_cast %147 : vector<8x8xf32> to vector<8x8x1xf32>
    %149 = tpu.reciprocal %148 {approx = true} : vector<8x8x1xf32> -> vector<8x8x1xf32>
    %150 = vector.broadcast %149 : vector<8x8x1xf32> to vector<8x8x8xf32>
    %151 = arith.mulf %146, %150 : vector<8x8x8xf32>
    "tpu.trace_start"() <{level = 10 : i32, message = "hst,htd->hsd"}> : () -> ()
    %cst_49 = arith.constant dense<0.000000e+00> : vector<8x8x4xf32>
    %152 = tpu.matmul %151, %140, %cst_49 {dimension_numbers = #tpu.dot_dimension_numbers<[2], [1], [1], [2], [0, 0, 0, 1, 1, 2], [0], [0]>} : vector<8x8x8xf32>, vector<8x8x4xf32>, vector<8x8x4xf32> -> vector<8x8x4xf32>
    "tpu.trace_stop"() : () -> ()
    %153 = vector.extract_strided_slice %152 {offsets = [0, 0, 0], sizes = [1, 8, 4], strides = [1, 1, 1]} : vector<8x8x4xf32> to vector<1x8x4xf32>
    %154 = vector.shape_cast %153 : vector<1x8x4xf32> to vector<8x4xf32>
    %155 = vector.extract_strided_slice %152 {offsets = [1, 0, 0], sizes = [1, 8, 4], strides = [1, 1, 1]} : vector<8x8x4xf32> to vector<1x8x4xf32>
    %156 = vector.shape_cast %155 : vector<1x8x4xf32> to vector<8x4xf32>
    %157 = vector.extract_strided_slice %152 {offsets = [2, 0, 0], sizes = [1, 8, 4], strides = [1, 1, 1]} : vector<8x8x4xf32> to vector<1x8x4xf32>
    %158 = vector.shape_cast %157 : vector<1x8x4xf32> to vector<8x4xf32>
    %159 = vector.extract_strided_slice %152 {offsets = [3, 0, 0], sizes = [1, 8, 4], strides = [1, 1, 1]} : vector<8x8x4xf32> to vector<1x8x4xf32>
    %160 = vector.shape_cast %159 : vector<1x8x4xf32> to vector<8x4xf32>
    %161 = vector.extract_strided_slice %152 {offsets = [4, 0, 0], sizes = [1, 8, 4], strides = [1, 1, 1]} : vector<8x8x4xf32> to vector<1x8x4xf32>
    %162 = vector.shape_cast %161 : vector<1x8x4xf32> to vector<8x4xf32>
    %163 = vector.extract_strided_slice %152 {offsets = [5, 0, 0], sizes = [1, 8, 4], strides = [1, 1, 1]} : vector<8x8x4xf32> to vector<1x8x4xf32>
    %164 = vector.shape_cast %163 : vector<1x8x4xf32> to vector<8x4xf32>
    %165 = vector.extract_strided_slice %152 {offsets = [6, 0, 0], sizes = [1, 8, 4], strides = [1, 1, 1]} : vector<8x8x4xf32> to vector<1x8x4xf32>
    %166 = vector.shape_cast %165 : vector<1x8x4xf32> to vector<8x4xf32>
    %167 = vector.extract_strided_slice %152 {offsets = [7, 0, 0], sizes = [1, 8, 4], strides = [1, 1, 1]} : vector<8x8x4xf32> to vector<1x8x4xf32>
    %168 = vector.shape_cast %167 : vector<1x8x4xf32> to vector<8x4xf32>
    %169 = tpu.concatenate %154, %156, %158, %160, %162, %164, %166, %168 in 1 : vector<8x4xf32>, vector<8x4xf32>, vector<8x4xf32>, vector<8x4xf32>, vector<8x4xf32>, vector<8x4xf32>, vector<8x4xf32>, vector<8x4xf32> -> vector<8x32xf32>
    %cst_50 = arith.constant dense<0.000000e+00> : vector<8x32xf32>
    %170 = tpu.matmul %169, %29, %cst_50 {dimension_numbers = #tpu.dot_dimension_numbers<[1], [0], [0], [1], [0, 0, 1, 1], [], []>} : vector<8x32xf32>, vector<32x32xf32>, vector<8x32xf32> -> vector<8x32xf32>
    %171 = vector.broadcast %30 : vector<1x32xf32> to vector<8x32xf32>
    %172 = arith.addf %170, %171 : vector<8x32xf32>
    %cst_51 = arith.constant dense<0.000000e+00> : vector<8xf32>
    %173 = vector.multi_reduction <add>, %172, %cst_51 [1] : vector<8x32xf32> to vector<8xf32>
    %174 = vector.shape_cast %173 : vector<8xf32> to vector<8x1xf32>
    %cst_52 = arith.constant 3.200000e+01 : f32
    %175 = vector.broadcast %cst_52 : f32 to vector<8x1xf32>
    %176 = arith.divf %174, %175 : vector<8x1xf32>
    %177 = vector.broadcast %176 : vector<8x1xf32> to vector<8x32xf32>
    %178 = arith.subf %172, %177 : vector<8x32xf32>
    %179 = arith.mulf %178, %178 : vector<8x32xf32>
    %cst_53 = arith.constant dense<0.000000e+00> : vector<8xf32>
    %180 = vector.multi_reduction <add>, %179, %cst_53 [1] : vector<8x32xf32> to vector<8xf32>
    %181 = vector.shape_cast %180 : vector<8xf32> to vector<8x1xf32>
    %cst_54 = arith.constant 3.200000e+01 : f32
    %182 = vector.broadcast %cst_54 : f32 to vector<8x1xf32>
    %183 = arith.divf %181, %182 : vector<8x1xf32>
    %cst_55 = arith.constant 9.99999974E-6 : f32
    %184 = vector.broadcast %cst_55 : f32 to vector<8x1xf32>
    %185 = arith.addf %183, %184 : vector<8x1xf32>
    %186 = math.rsqrt %185 : vector<8x1xf32>
    %187 = vector.broadcast %186 : vector<8x1xf32> to vector<8x32xf32>
    %188 = arith.mulf %178, %187 : vector<8x32xf32>
    %189 = vector.broadcast %25 : vector<1x32xf32> to vector<8x32xf32>
    %190 = arith.mulf %188, %189 : vector<8x32xf32>
    %191 = vector.broadcast %26 : vector<1x32xf32> to vector<8x32xf32>
    %192 = arith.addf %190, %191 : vector<8x32xf32>
    %193 = vector.extract_strided_slice %192 {offsets = [0, 0], sizes = [1, 32], strides = [1, 1]} : vector<8x32xf32> to vector<1x32xf32>
    %194 = vector.extract_strided_slice %192 {offsets = [1, 0], sizes = [1, 32], strides = [1, 1]} : vector<8x32xf32> to vector<1x32xf32>
    %195 = vector.extract_strided_slice %192 {offsets = [2, 0], sizes = [1, 32], strides = [1, 1]} : vector<8x32xf32> to vector<1x32xf32>
    %196 = vector.extract_strided_slice %192 {offsets = [3, 0], sizes = [1, 32], strides = [1, 1]} : vector<8x32xf32> to vector<1x32xf32>
    %197 = vector.extract_strided_slice %192 {offsets = [4, 0], sizes = [1, 32], strides = [1, 1]} : vector<8x32xf32> to vector<1x32xf32>
    %198 = vector.extract_strided_slice %192 {offsets = [5, 0], sizes = [1, 32], strides = [1, 1]} : vector<8x32xf32> to vector<1x32xf32>
    %199 = vector.extract_strided_slice %192 {offsets = [6, 0], sizes = [1, 32], strides = [1, 1]} : vector<8x32xf32> to vector<1x32xf32>
    %200 = vector.extract_strided_slice %192 {offsets = [7, 0], sizes = [1, 32], strides = [1, 1]} : vector<8x32xf32> to vector<1x32xf32>
    %201 = tpu.concatenate %193, %194, %195, %196, %197, %198, %199, %200 in 1 : vector<1x32xf32>, vector<1x32xf32>, vector<1x32xf32>, vector<1x32xf32>, vector<1x32xf32>, vector<1x32xf32>, vector<1x32xf32>, vector<1x32xf32> -> vector<1x256xf32>
    %202 = vector.extract_strided_slice %9 {offsets = [1, 0], sizes = [1, 32], strides = [1, 1]} : vector<2x32xf32> to vector<1x32xf32>
    %203 = vector.broadcast %14 : vector<32x1xf32> to vector<32x32xf32>
    %204 = vector.broadcast %202 : vector<1x32xf32> to vector<32x32xf32>
    %205 = arith.mulf %203, %204 : vector<32x32xf32>
    %206 = vector.extract_strided_slice %6 {offsets = [1, 0], sizes = [1, 32], strides = [1, 1]} : vector<2x32xf32> to vector<1x32xf32>
    %207 = vector.broadcast %15 : vector<32x1xf32> to vector<32x32xf32>
    %208 = vector.broadcast %206 : vector<1x32xf32> to vector<32x32xf32>
    %209 = arith.mulf %207, %208 : vector<32x32xf32>
    %210 = arith.addf %205, %209 : vector<32x32xf32>
    %211 = vector.extract_strided_slice %12 {offsets = [1, 0], sizes = [1, 32], strides = [1, 1]} : vector<2x32xf32> to vector<1x32xf32>
    %212 = vector.broadcast %16 : vector<32x1xf32> to vector<32x32xf32>
    %213 = vector.broadcast %211 : vector<1x32xf32> to vector<32x32xf32>
    %214 = arith.mulf %212, %213 : vector<32x32xf32>
    %215 = arith.addf %210, %214 : vector<32x32xf32>
    %216 = vector.broadcast %17 : vector<32x1xf32> to vector<32x32xf32>
    %217 = arith.addf %215, %216 : vector<32x32xf32>
    %cst_56 = arith.constant 0.000000e+00 : f32
    %218 = vector.broadcast %cst_56 : f32 to vector<32x32xf32>
    %219 = arith.maximumf %217, %218 : vector<32x32xf32>
    %cst_57 = arith.constant dense<0.000000e+00> : vector<8x32xf32>
    %220 = tpu.matmul %19, %219, %cst_57 {dimension_numbers = #tpu.dot_dimension_numbers<[1], [0], [0], [1], [0, 0, 1, 1], [], []>} : vector<8x32xf32>, vector<32x32xf32>, vector<8x32xf32> -> vector<8x32xf32>
    %cst_58 = arith.constant dense<0.000000e+00> : vector<8x32xf32>
    %221 = tpu.matmul %21, %219, %cst_58 {dimension_numbers = #tpu.dot_dimension_numbers<[1], [0], [0], [1], [0, 0, 1, 1], [], []>} : vector<8x32xf32>, vector<32x32xf32>, vector<8x32xf32> -> vector<8x32xf32>
    %cst_59 = arith.constant dense<0.000000e+00> : vector<8x32xf32>
    %222 = tpu.matmul %23, %219, %cst_59 {dimension_numbers = #tpu.dot_dimension_numbers<[1], [0], [0], [1], [0, 0, 1, 1], [], []>} : vector<8x32xf32>, vector<32x32xf32>, vector<8x32xf32> -> vector<8x32xf32>
    %cst_60 = arith.constant 0.000000e+00 : f32
    %223 = vector.broadcast %cst_60 : f32 to vector<8x1xf32>
    %224 = vector.extract_strided_slice %220 {offsets = [0, 0], sizes = [8, 31], strides = [1, 1]} : vector<8x32xf32> to vector<8x31xf32>
    %225 = tpu.concatenate %223, %224 in 1 : vector<8x1xf32>, vector<8x31xf32> -> vector<8x32xf32>
    %226 = arith.addf %225, %221 : vector<8x32xf32>
    %cst_61 = arith.constant 0.000000e+00 : f32
    %227 = vector.broadcast %cst_61 : f32 to vector<8x1xf32>
    %228 = vector.extract_strided_slice %222 {offsets = [0, 1], sizes = [8, 31], strides = [1, 1]} : vector<8x32xf32> to vector<8x31xf32>
    %229 = tpu.concatenate %228, %227 in 1 : vector<8x31xf32>, vector<8x1xf32> -> vector<8x32xf32>
    %230 = arith.addf %226, %229 : vector<8x32xf32>
    %231 = vector.broadcast %24 : vector<8x1xf32> to vector<8x32xf32>
    %232 = arith.addf %230, %231 : vector<8x32xf32>
    %cst_62 = arith.constant dense<0.000000e+00> : vector<8xf32>
    %233 = vector.multi_reduction <add>, %232, %cst_62 [1] : vector<8x32xf32> to vector<8xf32>
    %234 = vector.shape_cast %233 : vector<8xf32> to vector<8x1xf32>
    %cst_63 = arith.constant 3.200000e+01 : f32
    %235 = vector.broadcast %cst_63 : f32 to vector<8x1xf32>
    %236 = arith.divf %234, %235 : vector<8x1xf32>
    %237 = vector.broadcast %236 : vector<8x1xf32> to vector<8x32xf32>
    %238 = arith.subf %232, %237 : vector<8x32xf32>
    %239 = arith.mulf %238, %238 : vector<8x32xf32>
    %cst_64 = arith.constant dense<0.000000e+00> : vector<8xf32>
    %240 = vector.multi_reduction <add>, %239, %cst_64 [1] : vector<8x32xf32> to vector<8xf32>
    %241 = vector.shape_cast %240 : vector<8xf32> to vector<8x1xf32>
    %cst_65 = arith.constant 3.200000e+01 : f32
    %242 = vector.broadcast %cst_65 : f32 to vector<8x1xf32>
    %243 = arith.divf %241, %242 : vector<8x1xf32>
    %cst_66 = arith.constant 9.99999974E-6 : f32
    %244 = vector.broadcast %cst_66 : f32 to vector<8x1xf32>
    %245 = arith.addf %243, %244 : vector<8x1xf32>
    %246 = math.rsqrt %245 : vector<8x1xf32>
    %247 = vector.broadcast %246 : vector<8x1xf32> to vector<8x32xf32>
    %248 = arith.mulf %238, %247 : vector<8x32xf32>
    %249 = vector.broadcast %25 : vector<1x32xf32> to vector<8x32xf32>
    %250 = arith.mulf %248, %249 : vector<8x32xf32>
    %251 = vector.broadcast %26 : vector<1x32xf32> to vector<8x32xf32>
    %252 = arith.addf %250, %251 : vector<8x32xf32>
    %cst_67 = arith.constant dense<0.000000e+00> : vector<8x96xf32>
    %253 = tpu.matmul %252, %27, %cst_67 {dimension_numbers = #tpu.dot_dimension_numbers<[1], [0], [0], [1], [0, 0, 1, 1], [], []>} : vector<8x32xf32>, vector<32x96xf32>, vector<8x96xf32> -> vector<8x96xf32>
    %254 = vector.broadcast %28 : vector<1x96xf32> to vector<8x96xf32>
    %255 = arith.addf %253, %254 : vector<8x96xf32>
    %256 = vector.extract_strided_slice %255 {offsets = [0, 0], sizes = [8, 32], strides = [1, 1]} : vector<8x96xf32> to vector<8x32xf32>
    %cst_68 = arith.constant 5.000000e-01 : f32
    %257 = vector.broadcast %cst_68 : f32 to vector<8x32xf32>
    %258 = arith.mulf %256, %257 : vector<8x32xf32>
    %259 = vector.extract_strided_slice %255 {offsets = [0, 32], sizes = [8, 32], strides = [1, 1]} : vector<8x96xf32> to vector<8x32xf32>
    %260 = vector.extract_strided_slice %255 {offsets = [0, 64], sizes = [8, 32], strides = [1, 1]} : vector<8x96xf32> to vector<8x32xf32>
    %261 = vector.extract_strided_slice %258 {offsets = [0, 0], sizes = [8, 4], strides = [1, 1]} : vector<8x32xf32> to vector<8x4xf32>
    %262 = vector.extract_strided_slice %258 {offsets = [0, 4], sizes = [8, 4], strides = [1, 1]} : vector<8x32xf32> to vector<8x4xf32>
    %263 = vector.extract_strided_slice %258 {offsets = [0, 8], sizes = [8, 4], strides = [1, 1]} : vector<8x32xf32> to vector<8x4xf32>
    %264 = vector.extract_strided_slice %258 {offsets = [0, 12], sizes = [8, 4], strides = [1, 1]} : vector<8x32xf32> to vector<8x4xf32>
    %265 = vector.extract_strided_slice %258 {offsets = [0, 16], sizes = [8, 4], strides = [1, 1]} : vector<8x32xf32> to vector<8x4xf32>
    %266 = vector.extract_strided_slice %258 {offsets = [0, 20], sizes = [8, 4], strides = [1, 1]} : vector<8x32xf32> to vector<8x4xf32>
    %267 = vector.extract_strided_slice %258 {offsets = [0, 24], sizes = [8, 4], strides = [1, 1]} : vector<8x32xf32> to vector<8x4xf32>
    %268 = vector.extract_strided_slice %258 {offsets = [0, 28], sizes = [8, 4], strides = [1, 1]} : vector<8x32xf32> to vector<8x4xf32>
    %269 = vector.shape_cast %261 : vector<8x4xf32> to vector<1x8x4xf32>
    %270 = vector.shape_cast %262 : vector<8x4xf32> to vector<1x8x4xf32>
    %271 = vector.shape_cast %263 : vector<8x4xf32> to vector<1x8x4xf32>
    %272 = vector.shape_cast %264 : vector<8x4xf32> to vector<1x8x4xf32>
    %273 = vector.shape_cast %265 : vector<8x4xf32> to vector<1x8x4xf32>
    %274 = vector.shape_cast %266 : vector<8x4xf32> to vector<1x8x4xf32>
    %275 = vector.shape_cast %267 : vector<8x4xf32> to vector<1x8x4xf32>
    %276 = vector.shape_cast %268 : vector<8x4xf32> to vector<1x8x4xf32>
    %277 = tpu.concatenate %269, %270, %271, %272, %273, %274, %275, %276 in 0 : vector<1x8x4xf32>, vector<1x8x4xf32>, vector<1x8x4xf32>, vector<1x8x4xf32>, vector<1x8x4xf32>, vector<1x8x4xf32>, vector<1x8x4xf32>, vector<1x8x4xf32> -> vector<8x8x4xf32>
    %278 = vector.extract_strided_slice %259 {offsets = [0, 0], sizes = [8, 4], strides = [1, 1]} : vector<8x32xf32> to vector<8x4xf32>
    %279 = vector.extract_strided_slice %259 {offsets = [0, 4], sizes = [8, 4], strides = [1, 1]} : vector<8x32xf32> to vector<8x4xf32>
    %280 = vector.extract_strided_slice %259 {offsets = [0, 8], sizes = [8, 4], strides = [1, 1]} : vector<8x32xf32> to vector<8x4xf32>
    %281 = vector.extract_strided_slice %259 {offsets = [0, 12], sizes = [8, 4], strides = [1, 1]} : vector<8x32xf32> to vector<8x4xf32>
    %282 = vector.extract_strided_slice %259 {offsets = [0, 16], sizes = [8, 4], strides = [1, 1]} : vector<8x32xf32> to vector<8x4xf32>
    %283 = vector.extract_strided_slice %259 {offsets = [0, 20], sizes = [8, 4], strides = [1, 1]} : vector<8x32xf32> to vector<8x4xf32>
    %284 = vector.extract_strided_slice %259 {offsets = [0, 24], sizes = [8, 4], strides = [1, 1]} : vector<8x32xf32> to vector<8x4xf32>
    %285 = vector.extract_strided_slice %259 {offsets = [0, 28], sizes = [8, 4], strides = [1, 1]} : vector<8x32xf32> to vector<8x4xf32>
    %286 = vector.shape_cast %278 : vector<8x4xf32> to vector<1x8x4xf32>
    %287 = vector.shape_cast %279 : vector<8x4xf32> to vector<1x8x4xf32>
    %288 = vector.shape_cast %280 : vector<8x4xf32> to vector<1x8x4xf32>
    %289 = vector.shape_cast %281 : vector<8x4xf32> to vector<1x8x4xf32>
    %290 = vector.shape_cast %282 : vector<8x4xf32> to vector<1x8x4xf32>
    %291 = vector.shape_cast %283 : vector<8x4xf32> to vector<1x8x4xf32>
    %292 = vector.shape_cast %284 : vector<8x4xf32> to vector<1x8x4xf32>
    %293 = vector.shape_cast %285 : vector<8x4xf32> to vector<1x8x4xf32>
    %294 = tpu.concatenate %286, %287, %288, %289, %290, %291, %292, %293 in 0 : vector<1x8x4xf32>, vector<1x8x4xf32>, vector<1x8x4xf32>, vector<1x8x4xf32>, vector<1x8x4xf32>, vector<1x8x4xf32>, vector<1x8x4xf32>, vector<1x8x4xf32> -> vector<8x8x4xf32>
    %295 = vector.extract_strided_slice %260 {offsets = [0, 0], sizes = [8, 4], strides = [1, 1]} : vector<8x32xf32> to vector<8x4xf32>
    %296 = vector.extract_strided_slice %260 {offsets = [0, 4], sizes = [8, 4], strides = [1, 1]} : vector<8x32xf32> to vector<8x4xf32>
    %297 = vector.extract_strided_slice %260 {offsets = [0, 8], sizes = [8, 4], strides = [1, 1]} : vector<8x32xf32> to vector<8x4xf32>
    %298 = vector.extract_strided_slice %260 {offsets = [0, 12], sizes = [8, 4], strides = [1, 1]} : vector<8x32xf32> to vector<8x4xf32>
    %299 = vector.extract_strided_slice %260 {offsets = [0, 16], sizes = [8, 4], strides = [1, 1]} : vector<8x32xf32> to vector<8x4xf32>
    %300 = vector.extract_strided_slice %260 {offsets = [0, 20], sizes = [8, 4], strides = [1, 1]} : vector<8x32xf32> to vector<8x4xf32>
    %301 = vector.extract_strided_slice %260 {offsets = [0, 24], sizes = [8, 4], strides = [1, 1]} : vector<8x32xf32> to vector<8x4xf32>
    %302 = vector.extract_strided_slice %260 {offsets = [0, 28], sizes = [8, 4], strides = [1, 1]} : vector<8x32xf32> to vector<8x4xf32>
    %303 = vector.shape_cast %295 : vector<8x4xf32> to vector<1x8x4xf32>
    %304 = vector.shape_cast %296 : vector<8x4xf32> to vector<1x8x4xf32>
    %305 = vector.shape_cast %297 : vector<8x4xf32> to vector<1x8x4xf32>
    %306 = vector.shape_cast %298 : vector<8x4xf32> to vector<1x8x4xf32>
    %307 = vector.shape_cast %299 : vector<8x4xf32> to vector<1x8x4xf32>
    %308 = vector.shape_cast %300 : vector<8x4xf32> to vector<1x8x4xf32>
    %309 = vector.shape_cast %301 : vector<8x4xf32> to vector<1x8x4xf32>
    %310 = vector.shape_cast %302 : vector<8x4xf32> to vector<1x8x4xf32>
    %311 = tpu.concatenate %303, %304, %305, %306, %307, %308, %309, %310 in 0 : vector<1x8x4xf32>, vector<1x8x4xf32>, vector<1x8x4xf32>, vector<1x8x4xf32>, vector<1x8x4xf32>, vector<1x8x4xf32>, vector<1x8x4xf32>, vector<1x8x4xf32> -> vector<8x8x4xf32>
    "tpu.trace_start"() <{level = 10 : i32, message = "hsd,htd->hst"}> : () -> ()
    %cst_69 = arith.constant dense<0.000000e+00> : vector<8x8x8xf32>
    %312 = tpu.matmul %277, %294, %cst_69 {dimension_numbers = #tpu.dot_dimension_numbers<[2], [2], [1], [1], [0, 0, 0, 1, 1, 1], [0], [0]>} : vector<8x8x4xf32>, vector<8x8x4xf32>, vector<8x8x8xf32> -> vector<8x8x8xf32>
    "tpu.trace_stop"() : () -> ()
    %cst_70 = arith.constant dense<0xFF800000> : vector<8x8xf32>
    %313 = vector.multi_reduction <maximumf>, %312, %cst_70 [2] : vector<8x8x8xf32> to vector<8x8xf32>
    %314 = vector.shape_cast %313 : vector<8x8xf32> to vector<8x8x1xf32>
    %315 = vector.broadcast %314 : vector<8x8x1xf32> to vector<8x8x8xf32>
    %316 = arith.subf %312, %315 : vector<8x8x8xf32>
    %317 = math.exp %316 : vector<8x8x8xf32>
    %cst_71 = arith.constant dense<0.000000e+00> : vector<8x8xf32>
    %318 = vector.multi_reduction <add>, %317, %cst_71 [2] : vector<8x8x8xf32> to vector<8x8xf32>
    %319 = vector.shape_cast %318 : vector<8x8xf32> to vector<8x8x1xf32>
    %320 = tpu.reciprocal %319 {approx = true} : vector<8x8x1xf32> -> vector<8x8x1xf32>
    %321 = vector.broadcast %320 : vector<8x8x1xf32> to vector<8x8x8xf32>
    %322 = arith.mulf %317, %321 : vector<8x8x8xf32>
    "tpu.trace_start"() <{level = 10 : i32, message = "hst,htd->hsd"}> : () -> ()
    %cst_72 = arith.constant dense<0.000000e+00> : vector<8x8x4xf32>
    %323 = tpu.matmul %322, %311, %cst_72 {dimension_numbers = #tpu.dot_dimension_numbers<[2], [1], [1], [2], [0, 0, 0, 1, 1, 2], [0], [0]>} : vector<8x8x8xf32>, vector<8x8x4xf32>, vector<8x8x4xf32> -> vector<8x8x4xf32>
    "tpu.trace_stop"() : () -> ()
    %324 = vector.extract_strided_slice %323 {offsets = [0, 0, 0], sizes = [1, 8, 4], strides = [1, 1, 1]} : vector<8x8x4xf32> to vector<1x8x4xf32>
    %325 = vector.shape_cast %324 : vector<1x8x4xf32> to vector<8x4xf32>
    %326 = vector.extract_strided_slice %323 {offsets = [1, 0, 0], sizes = [1, 8, 4], strides = [1, 1, 1]} : vector<8x8x4xf32> to vector<1x8x4xf32>
    %327 = vector.shape_cast %326 : vector<1x8x4xf32> to vector<8x4xf32>
    %328 = vector.extract_strided_slice %323 {offsets = [2, 0, 0], sizes = [1, 8, 4], strides = [1, 1, 1]} : vector<8x8x4xf32> to vector<1x8x4xf32>
    %329 = vector.shape_cast %328 : vector<1x8x4xf32> to vector<8x4xf32>
    %330 = vector.extract_strided_slice %323 {offsets = [3, 0, 0], sizes = [1, 8, 4], strides = [1, 1, 1]} : vector<8x8x4xf32> to vector<1x8x4xf32>
    %331 = vector.shape_cast %330 : vector<1x8x4xf32> to vector<8x4xf32>
    %332 = vector.extract_strided_slice %323 {offsets = [4, 0, 0], sizes = [1, 8, 4], strides = [1, 1, 1]} : vector<8x8x4xf32> to vector<1x8x4xf32>
    %333 = vector.shape_cast %332 : vector<1x8x4xf32> to vector<8x4xf32>
    %334 = vector.extract_strided_slice %323 {offsets = [5, 0, 0], sizes = [1, 8, 4], strides = [1, 1, 1]} : vector<8x8x4xf32> to vector<1x8x4xf32>
    %335 = vector.shape_cast %334 : vector<1x8x4xf32> to vector<8x4xf32>
    %336 = vector.extract_strided_slice %323 {offsets = [6, 0, 0], sizes = [1, 8, 4], strides = [1, 1, 1]} : vector<8x8x4xf32> to vector<1x8x4xf32>
    %337 = vector.shape_cast %336 : vector<1x8x4xf32> to vector<8x4xf32>
    %338 = vector.extract_strided_slice %323 {offsets = [7, 0, 0], sizes = [1, 8, 4], strides = [1, 1, 1]} : vector<8x8x4xf32> to vector<1x8x4xf32>
    %339 = vector.shape_cast %338 : vector<1x8x4xf32> to vector<8x4xf32>
    %340 = tpu.concatenate %325, %327, %329, %331, %333, %335, %337, %339 in 1 : vector<8x4xf32>, vector<8x4xf32>, vector<8x4xf32>, vector<8x4xf32>, vector<8x4xf32>, vector<8x4xf32>, vector<8x4xf32>, vector<8x4xf32> -> vector<8x32xf32>
    %cst_73 = arith.constant dense<0.000000e+00> : vector<8x32xf32>
    %341 = tpu.matmul %340, %29, %cst_73 {dimension_numbers = #tpu.dot_dimension_numbers<[1], [0], [0], [1], [0, 0, 1, 1], [], []>} : vector<8x32xf32>, vector<32x32xf32>, vector<8x32xf32> -> vector<8x32xf32>
    %342 = vector.broadcast %30 : vector<1x32xf32> to vector<8x32xf32>
    %343 = arith.addf %341, %342 : vector<8x32xf32>
    %cst_74 = arith.constant dense<0.000000e+00> : vector<8xf32>
    %344 = vector.multi_reduction <add>, %343, %cst_74 [1] : vector<8x32xf32> to vector<8xf32>
    %345 = vector.shape_cast %344 : vector<8xf32> to vector<8x1xf32>
    %cst_75 = arith.constant 3.200000e+01 : f32
    %346 = vector.broadcast %cst_75 : f32 to vector<8x1xf32>
    %347 = arith.divf %345, %346 : vector<8x1xf32>
    %348 = vector.broadcast %347 : vector<8x1xf32> to vector<8x32xf32>
    %349 = arith.subf %343, %348 : vector<8x32xf32>
    %350 = arith.mulf %349, %349 : vector<8x32xf32>
    %cst_76 = arith.constant dense<0.000000e+00> : vector<8xf32>
    %351 = vector.multi_reduction <add>, %350, %cst_76 [1] : vector<8x32xf32> to vector<8xf32>
    %352 = vector.shape_cast %351 : vector<8xf32> to vector<8x1xf32>
    %cst_77 = arith.constant 3.200000e+01 : f32
    %353 = vector.broadcast %cst_77 : f32 to vector<8x1xf32>
    %354 = arith.divf %352, %353 : vector<8x1xf32>
    %cst_78 = arith.constant 9.99999974E-6 : f32
    %355 = vector.broadcast %cst_78 : f32 to vector<8x1xf32>
    %356 = arith.addf %354, %355 : vector<8x1xf32>
    %357 = math.rsqrt %356 : vector<8x1xf32>
    %358 = vector.broadcast %357 : vector<8x1xf32> to vector<8x32xf32>
    %359 = arith.mulf %349, %358 : vector<8x32xf32>
    %360 = vector.broadcast %25 : vector<1x32xf32> to vector<8x32xf32>
    %361 = arith.mulf %359, %360 : vector<8x32xf32>
    %362 = vector.broadcast %26 : vector<1x32xf32> to vector<8x32xf32>
    %363 = arith.addf %361, %362 : vector<8x32xf32>
    %364 = vector.extract_strided_slice %363 {offsets = [0, 0], sizes = [1, 32], strides = [1, 1]} : vector<8x32xf32> to vector<1x32xf32>
    %365 = vector.extract_strided_slice %363 {offsets = [1, 0], sizes = [1, 32], strides = [1, 1]} : vector<8x32xf32> to vector<1x32xf32>
    %366 = vector.extract_strided_slice %363 {offsets = [2, 0], sizes = [1, 32], strides = [1, 1]} : vector<8x32xf32> to vector<1x32xf32>
    %367 = vector.extract_strided_slice %363 {offsets = [3, 0], sizes = [1, 32], strides = [1, 1]} : vector<8x32xf32> to vector<1x32xf32>
    %368 = vector.extract_strided_slice %363 {offsets = [4, 0], sizes = [1, 32], strides = [1, 1]} : vector<8x32xf32> to vector<1x32xf32>
    %369 = vector.extract_strided_slice %363 {offsets = [5, 0], sizes = [1, 32], strides = [1, 1]} : vector<8x32xf32> to vector<1x32xf32>
    %370 = vector.extract_strided_slice %363 {offsets = [6, 0], sizes = [1, 32], strides = [1, 1]} : vector<8x32xf32> to vector<1x32xf32>
    %371 = vector.extract_strided_slice %363 {offsets = [7, 0], sizes = [1, 32], strides = [1, 1]} : vector<8x32xf32> to vector<1x32xf32>
    %372 = tpu.concatenate %364, %365, %366, %367, %368, %369, %370, %371 in 1 : vector<1x32xf32>, vector<1x32xf32>, vector<1x32xf32>, vector<1x32xf32>, vector<1x32xf32>, vector<1x32xf32>, vector<1x32xf32>, vector<1x32xf32> -> vector<1x256xf32>
    %373 = tpu.concatenate %201, %372 in 0 : vector<1x256xf32>, vector<1x256xf32> -> vector<2x256xf32>
    %c0_79 = arith.constant 0 : index
    %c0_80 = arith.constant 0 : index
    %c0_81 = arith.constant 0 : index
    %374 = vector.load %arg14[%c0_79, %c0_80, %c0_81] : memref<1x2x256xf32, #tpu.memory_space<vmem>>, vector<1x2x256xf32>
    %375 = vector.shape_cast %374 : vector<1x2x256xf32> to vector<2x256xf32>
    %376 = vector.shape_cast %373 : vector<2x256xf32> to vector<1x2x256xf32>
    tpu.vector_store %arg14[%c0_79, %c0_80, %c0_81], %376 {strides = array<i32>} : memref<1x2x256xf32, #tpu.memory_space<vmem>>, vector<1x2x256xf32>,
    return
  }
  func.func @transform_0(%arg0: i32) -> (i32, i32, i32) {
    %c0_i32 = arith.constant 0 : i32
    %c0_i32_0 = arith.constant 0 : i32
    %c0_i32_1 = arith.constant 0 : i32
    return %arg0, %c0_i32, %c0_i32_0 : i32, i32, i32
  }
  func.func @transform_1(%arg0: i32) -> (i32, i32) {
    %c0_i32 = arith.constant 0 : i32
    %c0_i32_0 = arith.constant 0 : i32
    %c0_i32_1 = arith.constant 0 : i32
    return %c0_i32, %c0_i32_0 : i32, i32
  }
  func.func @transform_2(%arg0: i32) -> (i32, i32) {
    %c0_i32 = arith.constant 0 : i32
    %c0_i32_0 = arith.constant 0 : i32
    %c0_i32_1 = arith.constant 0 : i32
    return %c0_i32, %c0_i32_0 : i32, i32
  }
  func.func @transform_3(%arg0: i32) -> (i32, i32) {
    %c0_i32 = arith.constant 0 : i32
    %c0_i32_0 = arith.constant 0 : i32
    %c0_i32_1 = arith.constant 0 : i32
    return %c0_i32, %c0_i32_0 : i32, i32
  }
  func.func @transform_4(%arg0: i32) -> (i32, i32) {
    %c0_i32 = arith.constant 0 : i32
    %c0_i32_0 = arith.constant 0 : i32
    %c0_i32_1 = arith.constant 0 : i32
    return %c0_i32, %c0_i32_0 : i32, i32
  }
  func.func @transform_5(%arg0: i32) -> (i32, i32, i32) {
    %c0_i32 = arith.constant 0 : i32
    %c0_i32_0 = arith.constant 0 : i32
    %c0_i32_1 = arith.constant 0 : i32
    %c0_i32_2 = arith.constant 0 : i32
    return %c0_i32, %c0_i32_0, %c0_i32_1 : i32, i32, i32
  }
  func.func @transform_6(%arg0: i32) -> (i32, i32) {
    %c0_i32 = arith.constant 0 : i32
    %c0_i32_0 = arith.constant 0 : i32
    %c0_i32_1 = arith.constant 0 : i32
    return %c0_i32, %c0_i32_0 : i32, i32
  }
  func.func @transform_7(%arg0: i32) -> (i32, i32) {
    %c0_i32 = arith.constant 0 : i32
    %c0_i32_0 = arith.constant 0 : i32
    %c0_i32_1 = arith.constant 0 : i32
    return %c0_i32, %c0_i32_0 : i32, i32
  }
  func.func @transform_8(%arg0: i32) -> (i32, i32) {
    %c0_i32 = arith.constant 0 : i32
    %c0_i32_0 = arith.constant 0 : i32
    %c0_i32_1 = arith.constant 0 : i32
    return %c0_i32, %c0_i32_0 : i32, i32
  }
  func.func @transform_9(%arg0: i32) -> (i32, i32) {
    %c0_i32 = arith.constant 0 : i32
    %c0_i32_0 = arith.constant 0 : i32
    %c0_i32_1 = arith.constant 0 : i32
    return %c0_i32, %c0_i32_0 : i32, i32
  }
  func.func @transform_10(%arg0: i32) -> (i32, i32) {
    %c0_i32 = arith.constant 0 : i32
    %c0_i32_0 = arith.constant 0 : i32
    %c0_i32_1 = arith.constant 0 : i32
    return %c0_i32, %c0_i32_0 : i32, i32
  }
  func.func @transform_11(%arg0: i32) -> (i32, i32) {
    %c0_i32 = arith.constant 0 : i32
    %c0_i32_0 = arith.constant 0 : i32
    %c0_i32_1 = arith.constant 0 : i32
    return %c0_i32, %c0_i32_0 : i32, i32
  }
  func.func @transform_12(%arg0: i32) -> (i32, i32) {
    %c0_i32 = arith.constant 0 : i32
    %c0_i32_0 = arith.constant 0 : i32
    %c0_i32_1 = arith.constant 0 : i32
    return %c0_i32, %c0_i32_0 : i32, i32
  }
  func.func @transform_13(%arg0: i32) -> (i32, i32, i32) {
    %c0_i32 = arith.constant 0 : i32
    %c0_i32_0 = arith.constant 0 : i32
    %c0_i32_1 = arith.constant 0 : i32
    return %arg0, %c0_i32, %c0_i32_0 : i32, i32, i32
  }
}

</mosaic_0001>

<llo_original>
// kernel: temporal_projection.1
$region0: #{temporal_projection.1}
  #allocation0 [shape = 'u32[]', space=smem, size = 0x4, offset = 0x4, fixed_abs, tag = 'smem constant byte address 0x4 - core index']
  #allocation1 [shape = 'u32[72,128]{1,0:T(1,128)}', space=vmem, size = 0x9000, scoped, tag = 'internal scratch']
  %s0 = inlined_call_operand.vmem [shape: f32[2,2,16], index: 0, kind: input, shape index: {}]
  %s1 = inlined_call_operand.hbm [shape: f32[16,32], index: 1, kind: input, shape index: {}]
  %s2 = inlined_call_operand.vmem [shape: f32[1,32], index: 2, kind: input, shape index: {}]
  %s3 = inlined_call_operand.vmem [shape: f32[32,3], index: 3, kind: input, shape index: {}]
  %s4 = inlined_call_operand.vmem [shape: f32[32,1], index: 4, kind: input, shape index: {}]
  %s5 = inlined_call_operand.hbm [shape: f32[3,8,32], index: 5, kind: input, shape index: {}]
  %s6 = inlined_call_operand.vmem [shape: f32[8,1], index: 6, kind: input, shape index: {}]
  %s7 = inlined_call_operand.vmem [shape: f32[1,32], index: 7, kind: input, shape index: {}]
  %s8 = inlined_call_operand.vmem [shape: f32[1,32], index: 8, kind: input, shape index: {}]
  %s9 = inlined_call_operand.vmem [shape: f32[32,96], index: 9, kind: input, shape index: {}]
  %s10 = inlined_call_operand.vmem [shape: f32[1,96], index: 10, kind: input, shape index: {}]
  %s11 = inlined_call_operand.vmem [shape: f32[32,32], index: 11, kind: input, shape index: {}]
  %s12 = inlined_call_operand.vmem [shape: f32[1,32], index: 12, kind: input, shape index: {}]
  %s13 = inlined_call_operand.vmem [shape: f32[2,2,256], index: 13, kind: output, shape index: {}]
  %s14 = sld [smem:[#allocation0]]
  $region93: #{temporal_projection.1} parent=0
    _
  %s16 = ssub.s32 1, %s14
  %s17 = scalar_select 0, %s16, %s14
  $region1: #{temporal_projection.1} parent=0
    #allocation2 [shape = 'u8[8192]{0}', space=vmem, size = 0x2000, scoped, tag = 'input window, operand 1, single buffered']
    #allocation3 [shape = 's32[2]{0}', space=sflag, size = 0x8, scoped, tag = 'scoped memory for temporal_projection.1']
    #allocation4 [shape = 'u8[12288]{0}', space=vmem, size = 0x3000, scoped, tag = 'input window, operand 5, single buffered']
    #allocation5 [shape = 's32[1]{0}', space=sflag, size = 0x4, scoped, tag = 'scoped memory for temporal_projection.1']
    %18 = vsyncpa [#allocation3], 0
    %19 = vsyncpa [#allocation5], 0
    loop: start=0, step=1, limit=4
    $region2: #{temporal_projection.1} parent=1 // loop_pre_header
      _
    $region3: #{temporal_projection.1} parent=1 // loop_header
      %s21 = sphi 0, %s25
      %p22 = scmp.ge.s32.totalorder %s21, 4
      %s31 = sphi 0, %s33
      %s34 = sphi 0, %s31
      %s35 = sphi 0, %s34
      %s51 = sphi 0, %s35
      %s55 = sphi 0, %s55
      %s57 = sphi 0, %s55
      %s58 = sphi 0, %s57
      %s72 = sphi 0, %s58
      %s76 = sphi 0, %s76
      %s78 = sphi 0, %s76
      %s79 = sphi 0, %s78
      %s93 = sphi 0, %s79
      %s97 = sphi 0, %s97
      %s99 = sphi 0, %s97
      %s100 = sphi 0, %s99
      %s114 = sphi 0, %s100
      %s118 = sphi 0, %s118
      %s120 = sphi 0, %s118
      %s121 = sphi 0, %s120
      %s135 = sphi 0, %s121
      %s139 = sphi 0, %s139
      %s141 = sphi 0, %s139
      %s142 = sphi 0, %s141
      %s156 = sphi 0, %s142
      %s160 = sphi 0, %s160
      %s162 = sphi 0, %s160
      %s163 = sphi 0, %s162
      %s177 = sphi 0, %s163
      %s181 = sphi 0, %s181
      %s183 = sphi 0, %s181
      %s184 = sphi 0, %s183
      %s198 = sphi 0, %s184
      %s202 = sphi 0, %s202
      %s204 = sphi 0, %s202
      %s205 = sphi 0, %s204
      %s219 = sphi 0, %s205
      %s223 = sphi 0, %s223
      %s225 = sphi 0, %s223
      %s226 = sphi 0, %s225
      %s240 = sphi 0, %s226
      %s244 = sphi 0, %s244
      %s246 = sphi 0, %s244
      %s247 = sphi 0, %s246
      %s261 = sphi 0, %s247
      %s265 = sphi 0, %s265
      %s267 = sphi 0, %s265
      %s268 = sphi 0, %s267
      %s282 = sphi 0, %s268
      %s286 = sphi 0, %s286
      %s288 = sphi 0, %s286
      %s289 = sphi 0, %s288
      %s303 = sphi 0, %s289
      %s309 = sphi 0, %s311
      %s312 = sphi 0, %s309
      %s313 = sphi 0, %s312
      %s329 = sphi 0, %s313
    $region4: #{temporal_projection.1} parent=1 // loop_header_branch
      %24 = sbr.rel (%p22) target = $region8
    $region5: #{temporal_projection.1} parent=1 // loop_body
      %s26 = ssub.s32 %s21, 1
      %s27 = ssub.s32 %s21, 2
      %s28 = sadd.s32 %s21, 1
      %s29 = ssub.s32 %s21, %s28
      %p30 = scmp.eq.s32.totalorder %s29, 0
      %s32 = sadd.s32 %s31, 1
      %s33 = scalar_select %p30, %s31, %s32
      %p36 = pneg %p30
      %p37 = scmp.eq.s32.totalorder %s21, 1
      %p38 = por %p36, %p37
      %p39 = scmp.ne.s32.totalorder %s31, %s34
      %p40 = scmp.eq.s32.totalorder %s21, 0
      %p41 = por %p39, %p40
      %p42 = scmp.ne.s32.totalorder %s31, %s34
      %p43 = scmp.eq.s32.totalorder %s26, 1
      %p44 = por %p42, %p43
      %p45 = scmp.ne.s32.totalorder %s34, %s35
      %p46 = scmp.eq.s32.totalorder %s26, 0
      %p47 = por %p45, %p46
      %p48 = scmp.ne.s32.totalorder %s34, %s35
      %p49 = scmp.eq.s32.totalorder %s27, 1
      %p50 = por %p48, %p49
      %p52 = scmp.ne.s32.totalorder %s35, %s51
      %p53 = scmp.eq.s32.totalorder %s27, 0
      %p54 = por %p52, %p53
      %s56 = sadd.s32 %s55, 1
      %p59 = scmp.eq.s32.totalorder %s21, 1
      %p60 = scmp.ne.s32.totalorder %s55, %s57
      %p61 = scmp.eq.s32.totalorder %s21, 0
      %p62 = por %p60, %p61
      %p63 = scmp.ne.s32.totalorder %s55, %s57
      %p64 = scmp.eq.s32.totalorder %s26, 1
      %p65 = por %p63, %p64
      %p66 = scmp.ne.s32.totalorder %s57, %s58
      %p67 = scmp.eq.s32.totalorder %s26, 0
      %p68 = por %p66, %p67
      %p69 = scmp.ne.s32.totalorder %s57, %s58
      %p70 = scmp.eq.s32.totalorder %s27, 1
      %p71 = por %p69, %p70
      %p73 = scmp.ne.s32.totalorder %s58, %s72
      %p74 = scmp.eq.s32.totalorder %s27, 0
      %p75 = por %p73, %p74
      %s77 = sadd.s32 %s76, 1
      %p80 = scmp.eq.s32.totalorder %s21, 1
      %p81 = scmp.ne.s32.totalorder %s76, %s78
      %p82 = scmp.eq.s32.totalorder %s21, 0
      %p83 = por %p81, %p82
      %p84 = scmp.ne.s32.totalorder %s76, %s78
      %p85 = scmp.eq.s32.totalorder %s26, 1
      %p86 = por %p84, %p85
      %p87 = scmp.ne.s32.totalorder %s78, %s79
      %p88 = scmp.eq.s32.totalorder %s26, 0
      %p89 = por %p87, %p88
      %p90 = scmp.ne.s32.totalorder %s78, %s79
      %p91 = scmp.eq.s32.totalorder %s27, 1
      %p92 = por %p90, %p91
      %p94 = scmp.ne.s32.totalorder %s79, %s93
      %p95 = scmp.eq.s32.totalorder %s27, 0
      %p96 = por %p94, %p95
      %s98 = sadd.s32 %s97, 1
      %p101 = scmp.eq.s32.totalorder %s21, 1
      %p102 = scmp.ne.s32.totalorder %s97, %s99
      %p103 = scmp.eq.s32.totalorder %s21, 0
      %p104 = por %p102, %p103
      %p105 = scmp.ne.s32.totalorder %s97, %s99
      %p106 = scmp.eq.s32.totalorder %s26, 1
      %p107 = por %p105, %p106
      %p108 = scmp.ne.s32.totalorder %s99, %s100
      %p109 = scmp.eq.s32.totalorder %s26, 0
      %p110 = por %p108, %p109
      %p111 = scmp.ne.s32.totalorder %s99, %s100
      %p112 = scmp.eq.s32.totalorder %s27, 1
      %p113 = por %p111, %p112
      %p115 = scmp.ne.s32.totalorder %s100, %s114
      %p116 = scmp.eq.s32.totalorder %s27, 0
      %p117 = por %p115, %p116
      %s119 = sadd.s32 %s118, 1
      %p122 = scmp.eq.s32.totalorder %s21, 1
      %p123 = scmp.ne.s32.totalorder %s118, %s120
      %p124 = scmp.eq.s32.totalorder %s21, 0
      %p125 = por %p123, %p124
      %p126 = scmp.ne.s32.totalorder %s118, %s120
      %p127 = scmp.eq.s32.totalorder %s26, 1
      %p128 = por %p126, %p127
      %p129 = scmp.ne.s32.totalorder %s120, %s121
      %p130 = scmp.eq.s32.totalorder %s26, 0
      %p131 = por %p129, %p130
      %p132 = scmp.ne.s32.totalorder %s120, %s121
      %p133 = scmp.eq.s32.totalorder %s27, 1
      %p134 = por %p132, %p133
      %p136 = scmp.ne.s32.totalorder %s121, %s135
      %p137 = scmp.eq.s32.totalorder %s27, 0
      %p138 = por %p136, %p137
      %s140 = sadd.s32 %s139, 1
      %p143 = scmp.eq.s32.totalorder %s21, 1
      %p144 = scmp.ne.s32.totalorder %s139, %s141
      %p145 = scmp.eq.s32.totalorder %s21, 0
      %p146 = por %p144, %p145
      %p147 = scmp.ne.s32.totalorder %s139, %s141
      %p148 = scmp.eq.s32.totalorder %s26, 1
      %p149 = por %p147, %p148
      %p150 = scmp.ne.s32.totalorder %s141, %s142
      %p151 = scmp.eq.s32.totalorder %s26, 0
      %p152 = por %p150, %p151
      %p153 = scmp.ne.s32.totalorder %s141, %s142
      %p154 = scmp.eq.s32.totalorder %s27, 1
      %p155 = por %p153, %p154
      %p157 = scmp.ne.s32.totalorder %s142, %s156
      %p158 = scmp.eq.s32.totalorder %s27, 0
      %p159 = por %p157, %p158
      %s161 = sadd.s32 %s160, 1
      %p164 = scmp.eq.s32.totalorder %s21, 1
      %p165 = scmp.ne.s32.totalorder %s160, %s162
      %p166 = scmp.eq.s32.totalorder %s21, 0
      %p167 = por %p165, %p166
      %p168 = scmp.ne.s32.totalorder %s160, %s162
      %p169 = scmp.eq.s32.totalorder %s26, 1
      %p170 = por %p168, %p169
      %p171 = scmp.ne.s32.totalorder %s162, %s163
      %p172 = scmp.eq.s32.totalorder %s26, 0
      %p173 = por %p171, %p172
      %p174 = scmp.ne.s32.totalorder %s162, %s163
      %p175 = scmp.eq.s32.totalorder %s27, 1
      %p176 = por %p174, %p175
      %p178 = scmp.ne.s32.totalorder %s163, %s177
      %p179 = scmp.eq.s32.totalorder %s27, 0
      %p180 = por %p178, %p179
      %s182 = sadd.s32 %s181, 1
      %p185 = scmp.eq.s32.totalorder %s21, 1
      %p186 = scmp.ne.s32.totalorder %s181, %s183
      %p187 = scmp.eq.s32.totalorder %s21, 0
      %p188 = por %p186, %p187
      %p189 = scmp.ne.s32.totalorder %s181, %s183
      %p190 = scmp.eq.s32.totalorder %s26, 1
      %p191 = por %p189, %p190
      %p192 = scmp.ne.s32.totalorder %s183, %s184
      %p193 = scmp.eq.s32.totalorder %s26, 0
      %p194 = por %p192, %p193
      %p195 = scmp.ne.s32.totalorder %s183, %s184
      %p196 = scmp.eq.s32.totalorder %s27, 1
      %p197 = por %p195, %p196
      %p199 = scmp.ne.s32.totalorder %s184, %s198
      %p200 = scmp.eq.s32.totalorder %s27, 0
      %p201 = por %p199, %p200
      %s203 = sadd.s32 %s202, 1
      %p206 = scmp.eq.s32.totalorder %s21, 1
      %p207 = scmp.ne.s32.totalorder %s202, %s204
      %p208 = scmp.eq.s32.totalorder %s21, 0
      %p209 = por %p207, %p208
      %p210 = scmp.ne.s32.totalorder %s202, %s204
      %p211 = scmp.eq.s32.totalorder %s26, 1
      %p212 = por %p210, %p211
      %p213 = scmp.ne.s32.totalorder %s204, %s205
      %p214 = scmp.eq.s32.totalorder %s26, 0
      %p215 = por %p213, %p214
      %p216 = scmp.ne.s32.totalorder %s204, %s205
      %p217 = scmp.eq.s32.totalorder %s27, 1
      %p218 = por %p216, %p217
      %p220 = scmp.ne.s32.totalorder %s205, %s219
      %p221 = scmp.eq.s32.totalorder %s27, 0
      %p222 = por %p220, %p221
      %s224 = sadd.s32 %s223, 1
      %p227 = scmp.eq.s32.totalorder %s21, 1
      %p228 = scmp.ne.s32.totalorder %s223, %s225
      %p229 = scmp.eq.s32.totalorder %s21, 0
      %p230 = por %p228, %p229
      %p231 = scmp.ne.s32.totalorder %s223, %s225
      %p232 = scmp.eq.s32.totalorder %s26, 1
      %p233 = por %p231, %p232
      %p234 = scmp.ne.s32.totalorder %s225, %s226
      %p235 = scmp.eq.s32.totalorder %s26, 0
      %p236 = por %p234, %p235
      %p237 = scmp.ne.s32.totalorder %s225, %s226
      %p238 = scmp.eq.s32.totalorder %s27, 1
      %p239 = por %p237, %p238
      %p241 = scmp.ne.s32.totalorder %s226, %s240
      %p242 = scmp.eq.s32.totalorder %s27, 0
      %p243 = por %p241, %p242
      %s245 = sadd.s32 %s244, 1
      %p248 = scmp.eq.s32.totalorder %s21, 1
      %p249 = scmp.ne.s32.totalorder %s244, %s246
      %p250 = scmp.eq.s32.totalorder %s21, 0
      %p251 = por %p249, %p250
      %p252 = scmp.ne.s32.totalorder %s244, %s246
      %p253 = scmp.eq.s32.totalorder %s26, 1
      %p254 = por %p252, %p253
      %p255 = scmp.ne.s32.totalorder %s246, %s247
      %p256 = scmp.eq.s32.totalorder %s26, 0
      %p257 = por %p255, %p256
      %p258 = scmp.ne.s32.totalorder %s246, %s247
      %p259 = scmp.eq.s32.totalorder %s27, 1
      %p260 = por %p258, %p259
      %p262 = scmp.ne.s32.totalorder %s247, %s261
      %p263 = scmp.eq.s32.totalorder %s27, 0
      %p264 = por %p262, %p263
      %s266 = sadd.s32 %s265, 1
      %p269 = scmp.eq.s32.totalorder %s21, 1
      %p270 = scmp.ne.s32.totalorder %s265, %s267
      %p271 = scmp.eq.s32.totalorder %s21, 0
      %p272 = por %p270, %p271
      %p273 = scmp.ne.s32.totalorder %s265, %s267
      %p274 = scmp.eq.s32.totalorder %s26, 1
      %p275 = por %p273, %p274
      %p276 = scmp.ne.s32.totalorder %s267, %s268
      %p277 = scmp.eq.s32.totalorder %s26, 0
      %p278 = por %p276, %p277
      %p279 = scmp.ne.s32.totalorder %s267, %s268
      %p280 = scmp.eq.s32.totalorder %s27, 1
      %p281 = por %p279, %p280
      %p283 = scmp.ne.s32.totalorder %s268, %s282
      %p284 = scmp.eq.s32.totalorder %s27, 0
      %p285 = por %p283, %p284
      %s287 = sadd.s32 %s286, 1
      %p290 = scmp.eq.s32.totalorder %s21, 1
      %p291 = scmp.ne.s32.totalorder %s286, %s288
      %p292 = scmp.eq.s32.totalorder %s21, 0
      %p293 = por %p291, %p292
      %p294 = scmp.ne.s32.totalorder %s286, %s288
      %p295 = scmp.eq.s32.totalorder %s26, 1
      %p296 = por %p294, %p295
      %p297 = scmp.ne.s32.totalorder %s288, %s289
      %p298 = scmp.eq.s32.totalorder %s26, 0
      %p299 = por %p297, %p298
      %p300 = scmp.ne.s32.totalorder %s288, %s289
      %p301 = scmp.eq.s32.totalorder %s27, 1
      %p302 = por %p300, %p301
      %p304 = scmp.ne.s32.totalorder %s289, %s303
      %p305 = scmp.eq.s32.totalorder %s27, 0
      %p306 = por %p304, %p305
      %s307 = ssub.s32 %s21, %s28
      %p308 = scmp.eq.s32.totalorder %s307, 0
      %s310 = sadd.s32 %s309, 1
      %s311 = scalar_select %p308, %s309, %s310
      %p314 = pneg %p308
      %p315 = scmp.eq.s32.totalorder %s21, 1
      %p316 = por %p314, %p315
      %p317 = scmp.ne.s32.totalorder %s309, %s312
      %p318 = scmp.eq.s32.totalorder %s21, 0
      %p319 = por %p317, %p318
      %p320 = scmp.ne.s32.totalorder %s309, %s312
      %p321 = scmp.eq.s32.totalorder %s26, 1
      %p322 = por %p320, %p321
      %p323 = scmp.ne.s32.totalorder %s312, %s313
      %p324 = scmp.eq.s32.totalorder %s26, 0
      %p325 = por %p323, %p324
      %p326 = scmp.ne.s32.totalorder %s312, %s313
      %p327 = scmp.eq.s32.totalorder %s27, 1
      %p328 = por %p326, %p327
      %p330 = scmp.ne.s32.totalorder %s313, %s329
      %p331 = scmp.eq.s32.totalorder %s27, 0
      %p332 = por %p330, %p331
      %p333 = scmp.le.s32.totalorder 1, %s21
      %p334 = scmp.lt.s32.totalorder %s21, 3
      %p335 = pnand %p333, %p334
      %p336 = pneg %p335
      // Predicated region
      $region9: #{temporal_projection.1} parent=5 // pred_check
        _
      $region10: #{temporal_projection.1} parent=5 // pred_check_branch
        %338 = sbr.rel (%p335) target = $region12
      $region11: #{temporal_projection.1} parent=5 // pred_region
        %s339 = ssub.s32 %s21, 1
        // Predicated region
        $region13: #{temporal_projection.1} parent=11 // pred_check
          %p340 = pneg %p68
        $region14: #{temporal_projection.1} parent=11 // pred_check_branch
          %342 = sbr.rel (%p340) target = $region16
        $region15: #{temporal_projection.1} parent=11 // pred_region
          %344 = vsyncadd [#allocation3], 0
          %s345 = sshll.u32 %s1, 4
          %s346 = int_to_ptr.hbm [resolvable:$true] %s345
          %s347 = sshll.u32 [#allocation2], 4
          %s348 = int_to_ptr.vmem [resolvable:$true] %s347
          %353 = dma.hbm_to_vmem [thread:$0]  %s346, 256, %s348, [#allocation3], 128, 128, 8
        $region16: #{temporal_projection.1} parent=11 // pred_fallthru
          _
        // Predicated region
        $region17: #{temporal_projection.1} parent=11 // pred_check
          %p354 = pneg %p89
        $region18: #{temporal_projection.1} parent=11 // pred_check_branch
          %356 = sbr.rel (%p354) target = $region20
        $region19: #{temporal_projection.1} parent=11 // pred_region
          _
        $region20: #{temporal_projection.1} parent=11 // pred_fallthru
          _
        // Predicated region
        $region21: #{temporal_projection.1} parent=11 // pred_check
          %p357 = pneg %p110
        $region22: #{temporal_projection.1} parent=11 // pred_check_branch
          %359 = sbr.rel (%p357) target = $region24
        $region23: #{temporal_projection.1} parent=11 // pred_region
          _
        $region24: #{temporal_projection.1} parent=11 // pred_fallthru
          _
        // Predicated region
        $region25: #{temporal_projection.1} parent=11 // pred_check
          %p360 = pneg %p131
        $region26: #{temporal_projection.1} parent=11 // pred_check_branch
          %362 = sbr.rel (%p360) target = $region28
        $region27: #{temporal_projection.1} parent=11 // pred_region
          _
        $region28: #{temporal_projection.1} parent=11 // pred_fallthru
          _
        // Predicated region
        $region29: #{temporal_projection.1} parent=11 // pred_check
          %p363 = pneg %p152
        $region30: #{temporal_projection.1} parent=11 // pred_check_branch
          %365 = sbr.rel (%p363) target = $region32
        $region31: #{temporal_projection.1} parent=11 // pred_region
          %367 = vsyncadd [#allocation5], 0
          %s368 = sshll.u32 %s5, 4
          %s369 = int_to_ptr.hbm [resolvable:$true] %s368
          %s370 = sshll.u32 [#allocation4], 4
          %s371 = int_to_ptr.vmem [resolvable:$true] %s370
          %376 = dma.hbm_to_vmem [thread:$0]  %s369, 384, %s371, [#allocation5], 128, 128, 8
        $region32: #{temporal_projection.1} parent=11 // pred_fallthru
          _
        // Predicated region
        $region33: #{temporal_projection.1} parent=11 // pred_check
          %p377 = pneg %p173
        $region34: #{temporal_projection.1} parent=11 // pred_check_branch
          %379 = sbr.rel (%p377) target = $region36
        $region35: #{temporal_projection.1} parent=11 // pred_region
          _
        $region36: #{temporal_projection.1} parent=11 // pred_fallthru
          _
        // Predicated region
        $region37: #{temporal_projection.1} parent=11 // pred_check
          %p380 = pneg %p194
        $region38: #{temporal_projection.1} parent=11 // pred_check_branch
          %382 = sbr.rel (%p380) target = $region40
        $region39: #{temporal_projection.1} parent=11 // pred_region
          _
        $region40: #{temporal_projection.1} parent=11 // pred_fallthru
          _
        // Predicated region
        $region41: #{temporal_projection.1} parent=11 // pred_check
          %p383 = pneg %p215
        $region42: #{temporal_projection.1} parent=11 // pred_check_branch
          %385 = sbr.rel (%p383) target = $region44
        $region43: #{temporal_projection.1} parent=11 // pred_region
          _
        $region44: #{temporal_projection.1} parent=11 // pred_fallthru
          _
        // Predicated region
        $region45: #{temporal_projection.1} parent=11 // pred_check
          %p386 = pneg %p236
        $region46: #{temporal_projection.1} parent=11 // pred_check_branch
          %388 = sbr.rel (%p386) target = $region48
        $region47: #{temporal_projection.1} parent=11 // pred_region
          _
        $region48: #{temporal_projection.1} parent=11 // pred_fallthru
          _
        // Predicated region
        $region49: #{temporal_projection.1} parent=11 // pred_check
          %p389 = pneg %p257
        $region50: #{temporal_projection.1} parent=11 // pred_check_branch
          %391 = sbr.rel (%p389) target = $region52
        $region51: #{temporal_projection.1} parent=11 // pred_region
          _
        $region52: #{temporal_projection.1} parent=11 // pred_fallthru
          _
        // Predicated region
        $region53: #{temporal_projection.1} parent=11 // pred_check
          %p392 = pneg %p278
        $region54: #{temporal_projection.1} parent=11 // pred_check_branch
          %394 = sbr.rel (%p392) target = $region56
        $region55: #{temporal_projection.1} parent=11 // pred_region
          _
        $region56: #{temporal_projection.1} parent=11 // pred_fallthru
          _
        // Predicated region
        $region57: #{temporal_projection.1} parent=11 // pred_check
          %p395 = pneg %p299
        $region58: #{temporal_projection.1} parent=11 // pred_check_branch
          %397 = sbr.rel (%p395) target = $region60
        $region59: #{temporal_projection.1} parent=11 // pred_region
          _
        $region60: #{temporal_projection.1} parent=11 // pred_fallthru
          _
      $region12: #{temporal_projection.1} parent=5 // pred_fallthru
        _
      %p398 = scmp.lt.s32.totalorder %s21, 2
      // Predicated region
      $region61: #{temporal_projection.1} parent=5 // pred_check
        %p399 = pneg %p398
      $region62: #{temporal_projection.1} parent=5 // pred_check_branch
        %401 = sbr.rel (%p399) target = $region64
      $region63: #{temporal_projection.1} parent=5 // pred_region
        // Predicated region
        $region65: #{temporal_projection.1} parent=63 // pred_check
          %p402 = pneg %p41
        $region66: #{temporal_projection.1} parent=63 // pred_check_branch
          %404 = sbr.rel (%p402) target = $region68
        $region67: #{temporal_projection.1} parent=63 // pred_region
          %p405 = scmp.lt.s32.totalorder %s21, 1
          %s406 = scalar_select %p405, %s21, 1
          %s407 = smul.addr %s406, 2
          %s408 = scalar_lea.vmem %s0, %s407
        $region68: #{temporal_projection.1} parent=63 // pred_fallthru
          _
      $region64: #{temporal_projection.1} parent=5 // pred_fallthru
        _
      %p409 = scmp.le.s32.totalorder 1, %s21
      %p410 = scmp.lt.s32.totalorder %s21, 3
      %p411 = pnand %p409, %p410
      %p412 = pneg %p411
      // Predicated region
      $region69: #{temporal_projection.1} parent=5 // pred_check
        _
      $region70: #{temporal_projection.1} parent=5 // pred_check_branch
        %414 = sbr.rel (%p411) target = $region72
      $region71: #{temporal_projection.1} parent=5 // pred_region
        %s415 = ssub.s32 %s21, 1
        // Predicated region
        $region73: #{temporal_projection.1} parent=71 // pred_check
          %p416 = pneg %p68
        $region74: #{temporal_projection.1} parent=71 // pred_check_branch
          %418 = sbr.rel (%p416) target = $region76
        $region75: #{temporal_projection.1} parent=71 // pred_region
          %420 = dma.done [#allocation3], 256
        $region76: #{temporal_projection.1} parent=71 // pred_fallthru
          _
        // Predicated region
        $region77: #{temporal_projection.1} parent=71 // pred_check
          %p421 = pneg %p152
        $region78: #{temporal_projection.1} parent=71 // pred_check_branch
          %423 = sbr.rel (%p421) target = $region80
        $region79: #{temporal_projection.1} parent=71 // pred_region
          %425 = dma.done [#allocation5], 384
        $region80: #{temporal_projection.1} parent=71 // pred_fallthru
          _
        %p426 = scmp.lt.s32.totalorder %s26, 1
        %s427 = scalar_select %p426, %s26, 1
        %s428 = smul.addr %s427, 2
        %s429 = scalar_lea.vmem %s0, %s428
        %p430 = pneg %p47
        %p431 = pneg %p44
        %p432 = pneg %p68
        %p433 = pneg %p65
        %p434 = pneg %p89
        %p435 = pneg %p86
        %p436 = pneg %p110
        %p437 = pneg %p107
        %p438 = pneg %p131
        %p439 = pneg %p128
        %p440 = pneg %p152
        %p441 = pneg %p149
        %p442 = pneg %p173
        %p443 = pneg %p170
        %p444 = pneg %p194
        %p445 = pneg %p191
        %p446 = pneg %p215
        %p447 = pneg %p212
        %p448 = pneg %p236
        %p449 = pneg %p233
        %p450 = pneg %p257
        %p451 = pneg %p254
        %p452 = pneg %p278
        %p453 = pneg %p275
        %p454 = pneg %p299
        %p455 = pneg %p296
        %p456 = pneg %p325
        %p457 = pneg %p322
        %p458 = scmp.lt.s32.totalorder %s26, 1
        %s459 = scalar_select %p458, %s26, 1
        %s460 = smul.addr %s459, 2
        %s461 = smul.addr %s460, 2
        %s462 = scalar_lea.vmem %s13, %s461
        %p463 = scmp.lt.s32.totalorder %s26, 1
        %s464 = scalar_select %p463, %s26, 1
        %s465 = smul.addr %s464, 2
        %s466 = scalar_lea.vmem %s0, %s465
        %p467 = scmp.lt.s32.totalorder %s26, 1
        %s468 = scalar_select %p467, %s26, 1
        %s469 = smul.addr %s468, 2
        %s470 = smul.addr %s469, 2
        %s471 = scalar_lea.vmem %s13, %s470
        %v472 = vld [vmem:[%s466] sm:$0x3]
        %v473 = vld [vmem:[#allocation2] sm:$0xff]
        %v474 = vld [vmem:[#allocation2 + $0x8] sm:$0xff]
        %v475 = vld [vmem:[%s2] sm:$0x1]
        %v477 = vperm.slane %v475, 0
        %vm479 = vcmask 130048
        %v481 = vsel %vm479, %v472, 0
        %483 = vmatpush.msra.mxu0 0.0
        %484 = vmatpush.msra.mxu0 0.0
        %485 = vmatpush.msra.mxu0 0.0
        %486 = vmatpush.msra.mxu0 0.0
        %487 = vmatpush.msra.mxu0 0.0
        %488 = vmatpush.msra.mxu0 0.0
        %489 = vmatpush.msra.mxu0 0.0
        %490 = vmatpush.msra.mxu0 0.0
        %491 = vmatpush.msra.mxu0 0.0
        %492 = vmatpush.msra.mxu0 0.0
        %493 = vmatpush.msra.mxu0 0.0
        %494 = vmatpush.msra.mxu0 0.0
        %495 = vmatpush.msra.mxu0 0.0
        %496 = vmatpush.msra.mxu0 0.0
        %497 = vmatpush.msra.mxu0 %v474
        %498 = vmatpush.msra.mxu0 %v473
        %499 = vmatmul.f32.gmra.mxu0 %v481
        %v500 = vpop.f32.mrf.mxu0
        %v501 = vadd.f32 %v477, %v500
        %502 = vdwg.mxu0
        %504 = vrot.lane.b32.xlu0 %v501, 1
        %v505 = vpop.permute.xlu0 %504
        %vm507 = vcmask 7168
        %v508 = vsel %vm507, 0.0, %v505
        %509 = vrot.lane.b32.xlu0 %v501, 127
        %v510 = vpop.permute.xlu0 %509
        %vm512 = vcmask 252928
        %v513 = vsel %vm512, %v510, 0.0
        %v514 = vld [vmem:[%s3] sm:$0xff]
        %v515 = vld [vmem:[%s3 + $0x8] sm:$0xff]
        %v516 = vld [vmem:[%s3 + $0x10] sm:$0xff]
        %v517 = vld [vmem:[%s3 + $0x18] sm:$0xff]
        %v518 = vld [vmem:[%s4] sm:$0xff]
        %v519 = vld [vmem:[%s4 + $0x8] sm:$0xff]
        %v520 = vld [vmem:[%s4 + $0x10] sm:$0xff]
        %v521 = vld [vmem:[%s4 + $0x18] sm:$0xff]
        %v522 = vld [vmem:[#allocation4] sm:$0xff]
        %s523 = scalar_lea.vmem [#allocation4], 8
        %v524 = vld [vmem:[%s523] sm:$0xff]
        %s525 = scalar_lea.vmem [#allocation4], 16
        %v526 = vld [vmem:[%s525] sm:$0xff]
        %v527 = vld [vmem:[%s6] sm:$0xff]
        %v528 = vld [vmem:[%s7] sm:$0x1]
        %v529 = vld [vmem:[%s8] sm:$0x1]
        %v530 = vld [vmem:[%s9] sm:$0xff]
        %v531 = vld [vmem:[%s9 + $0x8] sm:$0xff]
        %v532 = vld [vmem:[%s9 + $0x10] sm:$0xff]
        %v533 = vld [vmem:[%s9 + $0x18] sm:$0xff]
        %v534 = vld [vmem:[%s10] sm:$0x1]
        %v535 = vld [vmem:[%s11] sm:$0xff]
        %v536 = vld [vmem:[%s11 + $0x8] sm:$0xff]
        %v537 = vld [vmem:[%s11 + $0x10] sm:$0xff]
        %v538 = vld [vmem:[%s11 + $0x18] sm:$0xff]
        %v539 = vld [vmem:[%s12] sm:$0x1]
        %541 = vset.pattern.permute.xlu0 0
        %542 = vperm.xlu0 %541, %v514
        %v543 = vpop.permute.xlu0 %542
        %546 = vset.pattern.permute.xlu0 0
        %547 = vperm.xlu0 %546, %v515
        %v548 = vpop.permute.xlu0 %547
        %551 = vset.pattern.permute.xlu0 0
        %552 = vperm.xlu0 %551, %v516
        %v553 = vpop.permute.xlu0 %552
        %556 = vset.pattern.permute.xlu0 0
        %557 = vperm.xlu0 %556, %v517
        %v558 = vpop.permute.xlu0 %557
        %v560 = vperm.slane %v508, 0
        %v561 = vmul.f32 %v543, %v560
        %v562 = vmul.f32 %v548, %v560
        %v563 = vmul.f32 %v553, %v560
        %v564 = vmul.f32 %v558, %v560
        %565 = vset.pattern.permute.xlu0 1
        %566 = vperm.xlu0 %565, %v514
        %v567 = vpop.permute.xlu0 %566
        %569 = vset.pattern.permute.xlu0 1
        %570 = vperm.xlu0 %569, %v515
        %v571 = vpop.permute.xlu0 %570
        %573 = vset.pattern.permute.xlu0 1
        %574 = vperm.xlu0 %573, %v516
        %v575 = vpop.permute.xlu0 %574
        %577 = vset.pattern.permute.xlu0 1
        %578 = vperm.xlu0 %577, %v517
        %v579 = vpop.permute.xlu0 %578
        %v581 = vperm.slane %v501, 0
        %v582 = vmul.f32 %v567, %v581
        %v583 = vmul.f32 %v571, %v581
        %v584 = vmul.f32 %v575, %v581
        %v585 = vmul.f32 %v579, %v581
        %v586 = vadd.f32 %v561, %v582
        %v587 = vadd.f32 %v562, %v583
        %v588 = vadd.f32 %v563, %v584
        %v589 = vadd.f32 %v564, %v585
        %590 = vset.pattern.permute.xlu0 2
        %591 = vperm.xlu0 %590, %v514
        %v592 = vpop.permute.xlu0 %591
        %594 = vset.pattern.permute.xlu0 2
        %595 = vperm.xlu0 %594, %v515
        %v596 = vpop.permute.xlu0 %595
        %598 = vset.pattern.permute.xlu0 2
        %599 = vperm.xlu0 %598, %v516
        %v600 = vpop.permute.xlu0 %599
        %602 = vset.pattern.permute.xlu0 2
        %603 = vperm.xlu0 %602, %v517
        %v604 = vpop.permute.xlu0 %603
        %v606 = vperm.slane %v513, 0
        %v607 = vmul.f32 %v592, %v606
        %v608 = vmul.f32 %v596, %v606
        %v609 = vmul.f32 %v600, %v606
        %v610 = vmul.f32 %v604, %v606
        %v611 = vadd.f32 %v586, %v607
        %v612 = vadd.f32 %v587, %v608
        %v613 = vadd.f32 %v588, %v609
        %v614 = vadd.f32 %v589, %v610
        %616 = vset.pattern.permute.xlu0 0
        %617 = vperm.xlu0 %616, %v518
        %v618 = vpop.permute.xlu0 %617
        %621 = vset.pattern.permute.xlu0 0
        %622 = vperm.xlu0 %621, %v519
        %v623 = vpop.permute.xlu0 %622
        %626 = vset.pattern.permute.xlu0 0
        %627 = vperm.xlu0 %626, %v520
        %v628 = vpop.permute.xlu0 %627
        %631 = vset.pattern.permute.xlu0 0
        %632 = vperm.xlu0 %631, %v521
        %v633 = vpop.permute.xlu0 %632
        %v635 = vadd.f32 %v611, %v618
        %v636 = vadd.f32 %v612, %v623
        %v637 = vadd.f32 %v613, %v628
        %v638 = vadd.f32 %v614, %v633
        %v639 = vmax.f32 %v635, 0.0
        %v640 = vmax.f32 %v636, 0.0
        %v641 = vmax.f32 %v637, 0.0
        %v642 = vmax.f32 %v638, 0.0
        %vm643 = vcmask 261120
        %v645 = vsel %vm643, %v522, 0
        %647 = vmatpush.msra.mxu0 0.0
        %648 = vmatpush.msra.mxu0 0.0
        %649 = vmatpush.msra.mxu0 0.0
        %650 = vmatpush.msra.mxu0 0.0
        %651 = vmatpush.msra.mxu0 0.0
        %652 = vmatpush.msra.mxu0 0.0
        %653 = vmatpush.msra.mxu0 0.0
        %654 = vmatpush.msra.mxu0 0.0
        %655 = vmatpush.msra.mxu0 0.0
        %656 = vmatpush.msra.mxu0 0.0
        %657 = vmatpush.msra.mxu0 0.0
        %658 = vmatpush.msra.mxu0 0.0
        %659 = vmatpush.msra.mxu0 %v642
        %660 = vmatpush.msra.mxu0 %v641
        %661 = vmatpush.msra.mxu0 %v640
        %662 = vmatpush.msra.mxu0 %v639
        %663 = vmatmul.f32.gmra.mxu0 %v645
        %v664 = vpop.f32.mrf.mxu0
        %v665 = vadd.f32 0.0, %v664
        %666 = vdwg.mxu0
        %v668 = vsel %vm643, %v524, 0
        %670 = vmatpush.msra.mxu0 0.0
        %671 = vmatpush.msra.mxu0 0.0
        %672 = vmatpush.msra.mxu0 0.0
        %673 = vmatpush.msra.mxu0 0.0
        %674 = vmatpush.msra.mxu0 0.0
        %675 = vmatpush.msra.mxu0 0.0
        %676 = vmatpush.msra.mxu0 0.0
        %677 = vmatpush.msra.mxu0 0.0
        %678 = vmatpush.msra.mxu0 0.0
        %679 = vmatpush.msra.mxu0 0.0
        %680 = vmatpush.msra.mxu0 0.0
        %681 = vmatpush.msra.mxu0 0.0
        %682 = vmatpush.msra.mxu0 %v642
        %683 = vmatpush.msra.mxu0 %v641
        %684 = vmatpush.msra.mxu0 %v640
        %685 = vmatpush.msra.mxu0 %v639
        %686 = vmatmul.f32.gmra.mxu0 %v668
        %v687 = vpop.f32.mrf.mxu0
        %v688 = vadd.f32 0.0, %v687
        %689 = vdwg.mxu0
        %v691 = vsel %vm643, %v526, 0
        %693 = vmatpush.msra.mxu0 0.0
        %694 = vmatpush.msra.mxu0 0.0
        %695 = vmatpush.msra.mxu0 0.0
        %696 = vmatpush.msra.mxu0 0.0
        %697 = vmatpush.msra.mxu0 0.0
        %698 = vmatpush.msra.mxu0 0.0
        %699 = vmatpush.msra.mxu0 0.0
        %700 = vmatpush.msra.mxu0 0.0
        %701 = vmatpush.msra.mxu0 0.0
        %702 = vmatpush.msra.mxu0 0.0
        %703 = vmatpush.msra.mxu0 0.0
        %704 = vmatpush.msra.mxu0 0.0
        %705 = vmatpush.msra.mxu0 %v642
        %706 = vmatpush.msra.mxu0 %v641
        %707 = vmatpush.msra.mxu0 %v640
        %708 = vmatpush.msra.mxu0 %v639
        %709 = vmatmul.f32.gmra.mxu0 %v691
        %v710 = vpop.f32.mrf.mxu0
        %v711 = vadd.f32 0.0, %v710
        %712 = vdwg.mxu0
        %714 = vrot.lane.b32.xlu0 %v665, 1
        %v715 = vpop.permute.xlu0 %714
        %v717 = vsel %vm507, 0.0, %v715
        %v718 = vadd.f32 %v717, %v688
        %720 = vrot.lane.b32.xlu0 %v711, 127
        %v721 = vpop.permute.xlu0 %720
        %v723 = vsel %vm512, %v721, 0.0
        %v724 = vadd.f32 %v718, %v723
        %726 = vset.pattern.permute.xlu0 0
        %727 = vperm.xlu0 %726, %v527
        %v728 = vpop.permute.xlu0 %727
        %v730 = vadd.f32 %v724, %v728
        %v731 = vsel %vm643, %v730, 0.0
        %732 = vadd.xlane.f32.xlu0 %v731
        %v733 = vpop.xlane.xlu0 %732
        %v734 = vrcp.pop 32.0
        %v735 = vmul.f32 32.0, %v734
        %v736 = vsub.f32 1.0, %v735
        %v737 = vmul.f32 %v734, %v736
        %v738 = vadd.f32 %v734, %v737
        %vm739 = vweird.f32 %v734
        %v740 = vsel %vm739, %v734, %v738
        %v741 = vmul.f32 %v733, %v740
        %v742 = vsub.f32 %v730, %v741
        %v743 = vmul.f32 %v742, %v742
        %v744 = vsel %vm643, %v743, 0.0
        %745 = vadd.xlane.f32.xlu0 %v744
        %v746 = vpop.xlane.xlu0 %745
        %v747 = vmul.f32 %v746, %v740
        %v748 = vadd.f32 %v747, 1e-05
        %v749 = vrsqrt.pop %v748
        %v750 = vmul.f32 %v749, %v748
        %v751 = vmul.f32 %v750, %v749
        %v752 = vmul.f32 0.5, %v751
        %v753 = vsub.f32 1.5, %v752
        %v754 = vmul.f32 %v749, %v753
        %vm755 = vweird.f32 %v748
        %vm756 = vweird.f32 %v749
        %vm757 = vmor %vm755, %vm756
        %v758 = vsel %vm757, %v749, %v754
        %v759 = vmul.f32 %v742, %v758
        %v761 = vperm.slane %v528, 0
        %v763 = vmul.f32 %v759, %v761
        %v765 = vperm.slane %v529, 0
        %v767 = vadd.f32 %v763, %v765
        %v769 = vperm.slane %v534, 0
        %v772 = vsel %vm643, %v767, 0
        %774 = vmatpush.msra.mxu0 0.0
        %775 = vmatpush.msra.mxu0 0.0
        %776 = vmatpush.msra.mxu0 0.0
        %777 = vmatpush.msra.mxu0 0.0
        %778 = vmatpush.msra.mxu0 0.0
        %779 = vmatpush.msra.mxu0 0.0
        %780 = vmatpush.msra.mxu0 0.0
        %781 = vmatpush.msra.mxu0 0.0
        %782 = vmatpush.msra.mxu0 0.0
        %783 = vmatpush.msra.mxu0 0.0
        %784 = vmatpush.msra.mxu0 0.0
        %785 = vmatpush.msra.mxu0 0.0
        %786 = vmatpush.msra.mxu0 %v533
        %787 = vmatpush.msra.mxu0 %v532
        %788 = vmatpush.msra.mxu0 %v531
        %789 = vmatpush.msra.mxu0 %v530
        %790 = vmatmul.f32.gmra.mxu0 %v772
        %v791 = vpop.f32.mrf.mxu0
        %v792 = vadd.f32 %v769, %v791
        %793 = vdwg.mxu0
        %v794 = vmul.f32 %v792, 0.5
        %796 = vrot.lane.b32.xlu0 %v794, 124
        %v797 = vpop.permute.xlu0 %796
        %798 = vrot.lane.b32.xlu0 %v794, 120
        %v799 = vpop.permute.xlu0 %798
        %800 = vrot.lane.b32.xlu0 %v794, 116
        %v801 = vpop.permute.xlu0 %800
        %802 = vrot.lane.b32.xlu0 %v794, 112
        %v803 = vpop.permute.xlu0 %802
        %804 = vrot.lane.b32.xlu0 %v794, 108
        %v805 = vpop.permute.xlu0 %804
        %806 = vrot.lane.b32.xlu0 %v794, 104
        %v807 = vpop.permute.xlu0 %806
        %808 = vrot.lane.b32.xlu0 %v794, 100
        %v809 = vpop.permute.xlu0 %808
        %811 = vrot.lane.b32.xlu0 %v792, 124
        %v812 = vpop.permute.xlu0 %811
        %813 = vrot.lane.b32.xlu0 %v792, 120
        %v814 = vpop.permute.xlu0 %813
        %815 = vrot.lane.b32.xlu0 %v792, 116
        %v816 = vpop.permute.xlu0 %815
        %817 = vrot.lane.b32.xlu0 %v792, 112
        %v818 = vpop.permute.xlu0 %817
        %819 = vrot.lane.b32.xlu0 %v792, 108
        %v820 = vpop.permute.xlu0 %819
        %821 = vrot.lane.b32.xlu0 %v792, 104
        %v822 = vpop.permute.xlu0 %821
        %823 = vrot.lane.b32.xlu0 %v792, 100
        %v824 = vpop.permute.xlu0 %823
        %825 = vrot.lane.b32.xlu0 %v792, 96
        %v826 = vpop.permute.xlu0 %825
        %vm827 = vcmask 31744
        %v828 = vsel %vm827, %v794, 0
        %v830 = vsel %vm827, %v826, 0
        %832 = vmatpush.xpose.msra.mxu0 0.0
        %833 = vmatpush.xpose.msra.mxu0 0.0
        %834 = vmatpush.xpose.msra.mxu0 0.0
        %835 = vmatpush.xpose.msra.mxu0 0.0
        %836 = vmatpush.xpose.msra.mxu0 0.0
        %837 = vmatpush.xpose.msra.mxu0 0.0
        %838 = vmatpush.xpose.msra.mxu0 0.0
        %839 = vmatpush.xpose.msra.mxu0 0.0
        %840 = vmatpush.xpose.msra.mxu0 0.0
        %841 = vmatpush.xpose.msra.mxu0 0.0
        %842 = vmatpush.xpose.msra.mxu0 0.0
        %843 = vmatpush.xpose.msra.mxu0 0.0
        %844 = vmatpush.xpose.msra.mxu0 0.0
        %845 = vmatpush.xpose.msra.mxu0 0.0
        %846 = vmatpush.xpose.msra.mxu0 0.0
        %847 = vmatpush.xpose.msra.mxu0 %v830
        %848 = vmatmul.f32.gmra.mxu0 %v828
        %v849 = vpop.f32.mrf.mxu0
        %v850 = vadd.f32 0.0, %v849
        %851 = vdwg.mxu0
        %852 = vrot.lane.b32.xlu0 %v812, 96
        %v853 = vpop.permute.xlu0 %852
        %v854 = vsel %vm827, %v797, 0
        %v856 = vsel %vm827, %v853, 0
        %858 = vmatpush.xpose.msra.mxu0 0.0
        %859 = vmatpush.xpose.msra.mxu0 0.0
        %860 = vmatpush.xpose.msra.mxu0 0.0
        %861 = vmatpush.xpose.msra.mxu0 0.0
        %862 = vmatpush.xpose.msra.mxu0 0.0
        %863 = vmatpush.xpose.msra.mxu0 0.0
        %864 = vmatpush.xpose.msra.mxu0 0.0
        %865 = vmatpush.xpose.msra.mxu0 0.0
        %866 = vmatpush.xpose.msra.mxu0 0.0
        %867 = vmatpush.xpose.msra.mxu0 0.0
        %868 = vmatpush.xpose.msra.mxu0 0.0
        %869 = vmatpush.xpose.msra.mxu0 0.0
        %870 = vmatpush.xpose.msra.mxu0 0.0
        %871 = vmatpush.xpose.msra.mxu0 0.0
        %872 = vmatpush.xpose.msra.mxu0 0.0
        %873 = vmatpush.xpose.msra.mxu0 %v856
        %874 = vmatmul.f32.gmra.mxu0 %v854
        %v875 = vpop.f32.mrf.mxu0
        %v876 = vadd.f32 0.0, %v875
        %877 = vdwg.mxu0
        %878 = vrot.lane.b32.xlu0 %v814, 96
        %v879 = vpop.permute.xlu0 %878
        %v880 = vsel %vm827, %v799, 0
        %v882 = vsel %vm827, %v879, 0
        %884 = vmatpush.xpose.msra.mxu0 0.0
        %885 = vmatpush.xpose.msra.mxu0 0.0
        %886 = vmatpush.xpose.msra.mxu0 0.0
        %887 = vmatpush.xpose.msra.mxu0 0.0
        %888 = vmatpush.xpose.msra.mxu0 0.0
        %889 = vmatpush.xpose.msra.mxu0 0.0
        %890 = vmatpush.xpose.msra.mxu0 0.0
        %891 = vmatpush.xpose.msra.mxu0 0.0
        %892 = vmatpush.xpose.msra.mxu0 0.0
        %893 = vmatpush.xpose.msra.mxu0 0.0
        %894 = vmatpush.xpose.msra.mxu0 0.0
        %895 = vmatpush.xpose.msra.mxu0 0.0
        %896 = vmatpush.xpose.msra.mxu0 0.0
        %897 = vmatpush.xpose.msra.mxu0 0.0
        %898 = vmatpush.xpose.msra.mxu0 0.0
        %899 = vmatpush.xpose.msra.mxu0 %v882
        %900 = vmatmul.f32.gmra.mxu0 %v880
        %v901 = vpop.f32.mrf.mxu0
        %v902 = vadd.f32 0.0, %v901
        %903 = vdwg.mxu0
        %904 = vrot.lane.b32.xlu0 %v816, 96
        %v905 = vpop.permute.xlu0 %904
        %v906 = vsel %vm827, %v801, 0
        %v908 = vsel %vm827, %v905, 0
        %910 = vmatpush.xpose.msra.mxu0 0.0
        %911 = vmatpush.xpose.msra.mxu0 0.0
        %912 = vmatpush.xpose.msra.mxu0 0.0
        %913 = vmatpush.xpose.msra.mxu0 0.0
        %914 = vmatpush.xpose.msra.mxu0 0.0
        %915 = vmatpush.xpose.msra.mxu0 0.0
        %916 = vmatpush.xpose.msra.mxu0 0.0
        %917 = vmatpush.xpose.msra.mxu0 0.0
        %918 = vmatpush.xpose.msra.mxu0 0.0
        %919 = vmatpush.xpose.msra.mxu0 0.0
        %920 = vmatpush.xpose.msra.mxu0 0.0
        %921 = vmatpush.xpose.msra.mxu0 0.0
        %922 = vmatpush.xpose.msra.mxu0 0.0
        %923 = vmatpush.xpose.msra.mxu0 0.0
        %924 = vmatpush.xpose.msra.mxu0 0.0
        %925 = vmatpush.xpose.msra.mxu0 %v908
        %926 = vmatmul.f32.gmra.mxu0 %v906
        %v927 = vpop.f32.mrf.mxu0
        %v928 = vadd.f32 0.0, %v927
        %929 = vdwg.mxu0
        %930 = vrot.lane.b32.xlu0 %v818, 96
        %v931 = vpop.permute.xlu0 %930
        %v932 = vsel %vm827, %v803, 0
        %v934 = vsel %vm827, %v931, 0
        %936 = vmatpush.xpose.msra.mxu0 0.0
        %937 = vmatpush.xpose.msra.mxu0 0.0
        %938 = vmatpush.xpose.msra.mxu0 0.0
        %939 = vmatpush.xpose.msra.mxu0 0.0
        %940 = vmatpush.xpose.msra.mxu0 0.0
        %941 = vmatpush.xpose.msra.mxu0 0.0
        %942 = vmatpush.xpose.msra.mxu0 0.0
        %943 = vmatpush.xpose.msra.mxu0 0.0
        %944 = vmatpush.xpose.msra.mxu0 0.0
        %945 = vmatpush.xpose.msra.mxu0 0.0
        %946 = vmatpush.xpose.msra.mxu0 0.0
        %947 = vmatpush.xpose.msra.mxu0 0.0
        %948 = vmatpush.xpose.msra.mxu0 0.0
        %949 = vmatpush.xpose.msra.mxu0 0.0
        %950 = vmatpush.xpose.msra.mxu0 0.0
        %951 = vmatpush.xpose.msra.mxu0 %v934
        %952 = vmatmul.f32.gmra.mxu0 %v932
        %v953 = vpop.f32.mrf.mxu0
        %v954 = vadd.f32 0.0, %v953
        %955 = vdwg.mxu0
        %956 = vrot.lane.b32.xlu0 %v820, 96
        %v957 = vpop.permute.xlu0 %956
        %v958 = vsel %vm827, %v805, 0
        %v960 = vsel %vm827, %v957, 0
        %962 = vmatpush.xpose.msra.mxu0 0.0
        %963 = vmatpush.xpose.msra.mxu0 0.0
        %964 = vmatpush.xpose.msra.mxu0 0.0
        %965 = vmatpush.xpose.msra.mxu0 0.0
        %966 = vmatpush.xpose.msra.mxu0 0.0
        %967 = vmatpush.xpose.msra.mxu0 0.0
        %968 = vmatpush.xpose.msra.mxu0 0.0
        %969 = vmatpush.xpose.msra.mxu0 0.0
        %970 = vmatpush.xpose.msra.mxu0 0.0
        %971 = vmatpush.xpose.msra.mxu0 0.0
        %972 = vmatpush.xpose.msra.mxu0 0.0
        %973 = vmatpush.xpose.msra.mxu0 0.0
        %974 = vmatpush.xpose.msra.mxu0 0.0
        %975 = vmatpush.xpose.msra.mxu0 0.0
        %976 = vmatpush.xpose.msra.mxu0 0.0
        %977 = vmatpush.xpose.msra.mxu0 %v960
        %978 = vmatmul.f32.gmra.mxu0 %v958
        %v979 = vpop.f32.mrf.mxu0
        %v980 = vadd.f32 0.0, %v979
        %981 = vdwg.mxu0
        %982 = vrot.lane.b32.xlu0 %v822, 96
        %v983 = vpop.permute.xlu0 %982
        %v984 = vsel %vm827, %v807, 0
        %v986 = vsel %vm827, %v983, 0
        %988 = vmatpush.xpose.msra.mxu0 0.0
        %989 = vmatpush.xpose.msra.mxu0 0.0
        %990 = vmatpush.xpose.msra.mxu0 0.0
        %991 = vmatpush.xpose.msra.mxu0 0.0
        %992 = vmatpush.xpose.msra.mxu0 0.0
        %993 = vmatpush.xpose.msra.mxu0 0.0
        %994 = vmatpush.xpose.msra.mxu0 0.0
        %995 = vmatpush.xpose.msra.mxu0 0.0
        %996 = vmatpush.xpose.msra.mxu0 0.0
        %997 = vmatpush.xpose.msra.mxu0 0.0
        %998 = vmatpush.xpose.msra.mxu0 0.0
        %999 = vmatpush.xpose.msra.mxu0 0.0
        %1000 = vmatpush.xpose.msra.mxu0 0.0
        %1001 = vmatpush.xpose.msra.mxu0 0.0
        %1002 = vmatpush.xpose.msra.mxu0 0.0
        %1003 = vmatpush.xpose.msra.mxu0 %v986
        %1004 = vmatmul.f32.gmra.mxu0 %v984
        %v1005 = vpop.f32.mrf.mxu0
        %v1006 = vadd.f32 0.0, %v1005
        %1007 = vdwg.mxu0
        %1008 = vrot.lane.b32.xlu0 %v824, 96
        %v1009 = vpop.permute.xlu0 %1008
        %v1010 = vsel %vm827, %v809, 0
        %v1012 = vsel %vm827, %v1009, 0
        %1014 = vmatpush.xpose.msra.mxu0 0.0
        %1015 = vmatpush.xpose.msra.mxu0 0.0
        %1016 = vmatpush.xpose.msra.mxu0 0.0
        %1017 = vmatpush.xpose.msra.mxu0 0.0
        %1018 = vmatpush.xpose.msra.mxu0 0.0
        %1019 = vmatpush.xpose.msra.mxu0 0.0
        %1020 = vmatpush.xpose.msra.mxu0 0.0
        %1021 = vmatpush.xpose.msra.mxu0 0.0
        %1022 = vmatpush.xpose.msra.mxu0 0.0
        %1023 = vmatpush.xpose.msra.mxu0 0.0
        %1024 = vmatpush.xpose.msra.mxu0 0.0
        %1025 = vmatpush.xpose.msra.mxu0 0.0
        %1026 = vmatpush.xpose.msra.mxu0 0.0
        %1027 = vmatpush.xpose.msra.mxu0 0.0
        %1028 = vmatpush.xpose.msra.mxu0 0.0
        %1029 = vmatpush.xpose.msra.mxu0 %v1012
        %1030 = vmatmul.f32.gmra.mxu0 %v1010
        %v1031 = vpop.f32.mrf.mxu0
        %v1032 = vadd.f32 0.0, %v1031
        %1033 = vdwg.mxu0
        %vm1034 = vcmask 64512
        %v1035 = vsel %vm1034, %v850, -inf
        %1036 = vmax.xlane.f32.xlu0 %v1035
        %v1037 = vpop.xlane.xlu0 %1036
        %v1038 = vsel %vm1034, %v876, -inf
        %1039 = vmax.xlane.f32.xlu0 %v1038
        %v1040 = vpop.xlane.xlu0 %1039
        %v1041 = vsel %vm1034, %v902, -inf
        %1042 = vmax.xlane.f32.xlu0 %v1041
        %v1043 = vpop.xlane.xlu0 %1042
        %v1044 = vsel %vm1034, %v928, -inf
        %1045 = vmax.xlane.f32.xlu0 %v1044
        %v1046 = vpop.xlane.xlu0 %1045
        %v1047 = vsel %vm1034, %v954, -inf
        %1048 = vmax.xlane.f32.xlu0 %v1047
        %v1049 = vpop.xlane.xlu0 %1048
        %v1050 = vsel %vm1034, %v980, -inf
        %1051 = vmax.xlane.f32.xlu0 %v1050
        %v1052 = vpop.xlane.xlu0 %1051
        %v1053 = vsel %vm1034, %v1006, -inf
        %1054 = vmax.xlane.f32.xlu0 %v1053
        %v1055 = vpop.xlane.xlu0 %1054
        %v1056 = vsel %vm1034, %v1032, -inf
        %1057 = vmax.xlane.f32.xlu0 %v1056
        %v1058 = vpop.xlane.xlu0 %1057
        %v1059 = vsub.f32 %v850, %v1037
        %v1060 = vsub.f32 %v876, %v1040
        %v1061 = vsub.f32 %v902, %v1043
        %v1062 = vsub.f32 %v928, %v1046
        %v1063 = vsub.f32 %v954, %v1049
        %v1064 = vsub.f32 %v980, %v1052
        %v1065 = vsub.f32 %v1006, %v1055
        %v1066 = vsub.f32 %v1032, %v1058
        %v1067 = vmul.f32 %v1059, 1.442695
        %v1068 = vpow.pop %v1067
        %v1069 = vmul.f32 %v1060, 1.442695
        %v1070 = vpow.pop %v1069
        %v1071 = vmul.f32 %v1061, 1.442695
        %v1072 = vpow.pop %v1071
        %v1073 = vmul.f32 %v1062, 1.442695
        %v1074 = vpow.pop %v1073
        %v1075 = vmul.f32 %v1063, 1.442695
        %v1076 = vpow.pop %v1075
        %v1077 = vmul.f32 %v1064, 1.442695
        %v1078 = vpow.pop %v1077
        %v1079 = vmul.f32 %v1065, 1.442695
        %v1080 = vpow.pop %v1079
        %v1081 = vmul.f32 %v1066, 1.442695
        %v1082 = vpow.pop %v1081
        %v1083 = vsel %vm1034, %v1068, 0.0
        %1084 = vadd.xlane.f32.xlu0 %v1083
        %v1085 = vpop.xlane.xlu0 %1084
        %v1086 = vsel %vm1034, %v1070, 0.0
        %1087 = vadd.xlane.f32.xlu0 %v1086
        %v1088 = vpop.xlane.xlu0 %1087
        %v1089 = vsel %vm1034, %v1072, 0.0
        %1090 = vadd.xlane.f32.xlu0 %v1089
        %v1091 = vpop.xlane.xlu0 %1090
        %v1092 = vsel %vm1034, %v1074, 0.0
        %1093 = vadd.xlane.f32.xlu0 %v1092
        %v1094 = vpop.xlane.xlu0 %1093
        %v1095 = vsel %vm1034, %v1076, 0.0
        %1096 = vadd.xlane.f32.xlu0 %v1095
        %v1097 = vpop.xlane.xlu0 %1096
        %v1098 = vsel %vm1034, %v1078, 0.0
        %1099 = vadd.xlane.f32.xlu0 %v1098
        %v1100 = vpop.xlane.xlu0 %1099
        %v1101 = vsel %vm1034, %v1080, 0.0
        %1102 = vadd.xlane.f32.xlu0 %v1101
        %v1103 = vpop.xlane.xlu0 %1102
        %v1104 = vsel %vm1034, %v1082, 0.0
        %1105 = vadd.xlane.f32.xlu0 %v1104
        %v1106 = vpop.xlane.xlu0 %1105
        %v1107 = vrcp.pop %v1085
        %v1108 = vrcp.pop %v1088
        %v1109 = vrcp.pop %v1091
        %v1110 = vrcp.pop %v1094
        %v1111 = vrcp.pop %v1097
        %v1112 = vrcp.pop %v1100
        %v1113 = vrcp.pop %v1103
        %v1114 = vrcp.pop %v1106
        %v1115 = vmul.f32 %v1068, %v1107
        %v1116 = vmul.f32 %v1070, %v1108
        %v1117 = vmul.f32 %v1072, %v1109
        %v1118 = vmul.f32 %v1074, %v1110
        %v1119 = vmul.f32 %v1076, %v1111
        %v1120 = vmul.f32 %v1078, %v1112
        %v1121 = vmul.f32 %v1080, %v1113
        %v1122 = vmul.f32 %v1082, %v1114
        %1123 = vrot.lane.b32.xlu0 %v792, 64
        %v1124 = vpop.permute.xlu0 %1123
        %v1127 = vsel %vm1034, %v1115, 0
        %1129 = vmatpush.msra.mxu0 0.0
        %1130 = vmatpush.msra.mxu0 0.0
        %1131 = vmatpush.msra.mxu0 0.0
        %1132 = vmatpush.msra.mxu0 0.0
        %1133 = vmatpush.msra.mxu0 0.0
        %1134 = vmatpush.msra.mxu0 0.0
        %1135 = vmatpush.msra.mxu0 0.0
        %1136 = vmatpush.msra.mxu0 0.0
        %1137 = vmatpush.msra.mxu0 0.0
        %1138 = vmatpush.msra.mxu0 0.0
        %1139 = vmatpush.msra.mxu0 0.0
        %1140 = vmatpush.msra.mxu0 0.0
        %1141 = vmatpush.msra.mxu0 0.0
        %1142 = vmatpush.msra.mxu0 0.0
        %1143 = vmatpush.msra.mxu0 0.0
        %1144 = vmatpush.msra.mxu0 %v1124
        %1145 = vmatmul.f32.gmra.mxu0 %v1127
        %v1146 = vpop.f32.mrf.mxu0
        %v1147 = vadd.f32 0.0, %v1146
        %1148 = vdwg.mxu0
        %1149 = vrot.lane.b32.xlu0 %v812, 64
        %v1150 = vpop.permute.xlu0 %1149
        %v1153 = vsel %vm1034, %v1116, 0
        %1155 = vmatpush.msra.mxu0 0.0
        %1156 = vmatpush.msra.mxu0 0.0
        %1157 = vmatpush.msra.mxu0 0.0
        %1158 = vmatpush.msra.mxu0 0.0
        %1159 = vmatpush.msra.mxu0 0.0
        %1160 = vmatpush.msra.mxu0 0.0
        %1161 = vmatpush.msra.mxu0 0.0
        %1162 = vmatpush.msra.mxu0 0.0
        %1163 = vmatpush.msra.mxu0 0.0
        %1164 = vmatpush.msra.mxu0 0.0
        %1165 = vmatpush.msra.mxu0 0.0
        %1166 = vmatpush.msra.mxu0 0.0
        %1167 = vmatpush.msra.mxu0 0.0
        %1168 = vmatpush.msra.mxu0 0.0
        %1169 = vmatpush.msra.mxu0 0.0
        %1170 = vmatpush.msra.mxu0 %v1150
        %1171 = vmatmul.f32.gmra.mxu0 %v1153
        %v1172 = vpop.f32.mrf.mxu0
        %v1173 = vadd.f32 0.0, %v1172
        %1174 = vdwg.mxu0
        %1175 = vrot.lane.b32.xlu0 %v814, 64
        %v1176 = vpop.permute.xlu0 %1175
        %v1179 = vsel %vm1034, %v1117, 0
        %1181 = vmatpush.msra.mxu0 0.0
        %1182 = vmatpush.msra.mxu0 0.0
        %1183 = vmatpush.msra.mxu0 0.0
        %1184 = vmatpush.msra.mxu0 0.0
        %1185 = vmatpush.msra.mxu0 0.0
        %1186 = vmatpush.msra.mxu0 0.0
        %1187 = vmatpush.msra.mxu0 0.0
        %1188 = vmatpush.msra.mxu0 0.0
        %1189 = vmatpush.msra.mxu0 0.0
        %1190 = vmatpush.msra.mxu0 0.0
        %1191 = vmatpush.msra.mxu0 0.0
        %1192 = vmatpush.msra.mxu0 0.0
        %1193 = vmatpush.msra.mxu0 0.0
        %1194 = vmatpush.msra.mxu0 0.0
        %1195 = vmatpush.msra.mxu0 0.0
        %1196 = vmatpush.msra.mxu0 %v1176
        %1197 = vmatmul.f32.gmra.mxu0 %v1179
        %v1198 = vpop.f32.mrf.mxu0
        %v1199 = vadd.f32 0.0, %v1198
        %1200 = vdwg.mxu0
        %1201 = vrot.lane.b32.xlu0 %v816, 64
        %v1202 = vpop.permute.xlu0 %1201
        %v1205 = vsel %vm1034, %v1118, 0
        %1207 = vmatpush.msra.mxu0 0.0
        %1208 = vmatpush.msra.mxu0 0.0
        %1209 = vmatpush.msra.mxu0 0.0
        %1210 = vmatpush.msra.mxu0 0.0
        %1211 = vmatpush.msra.mxu0 0.0
        %1212 = vmatpush.msra.mxu0 0.0
        %1213 = vmatpush.msra.mxu0 0.0
        %1214 = vmatpush.msra.mxu0 0.0
        %1215 = vmatpush.msra.mxu0 0.0
        %1216 = vmatpush.msra.mxu0 0.0
        %1217 = vmatpush.msra.mxu0 0.0
        %1218 = vmatpush.msra.mxu0 0.0
        %1219 = vmatpush.msra.mxu0 0.0
        %1220 = vmatpush.msra.mxu0 0.0
        %1221 = vmatpush.msra.mxu0 0.0
        %1222 = vmatpush.msra.mxu0 %v1202
        %1223 = vmatmul.f32.gmra.mxu0 %v1205
        %v1224 = vpop.f32.mrf.mxu0
        %v1225 = vadd.f32 0.0, %v1224
        %1226 = vdwg.mxu0
        %1227 = vrot.lane.b32.xlu0 %v818, 64
        %v1228 = vpop.permute.xlu0 %1227
        %v1231 = vsel %vm1034, %v1119, 0
        %1233 = vmatpush.msra.mxu0 0.0
        %1234 = vmatpush.msra.mxu0 0.0
        %1235 = vmatpush.msra.mxu0 0.0
        %1236 = vmatpush.msra.mxu0 0.0
        %1237 = vmatpush.msra.mxu0 0.0
        %1238 = vmatpush.msra.mxu0 0.0
        %1239 = vmatpush.msra.mxu0 0.0
        %1240 = vmatpush.msra.mxu0 0.0
        %1241 = vmatpush.msra.mxu0 0.0
        %1242 = vmatpush.msra.mxu0 0.0
        %1243 = vmatpush.msra.mxu0 0.0
        %1244 = vmatpush.msra.mxu0 0.0
        %1245 = vmatpush.msra.mxu0 0.0
        %1246 = vmatpush.msra.mxu0 0.0
        %1247 = vmatpush.msra.mxu0 0.0
        %1248 = vmatpush.msra.mxu0 %v1228
        %1249 = vmatmul.f32.gmra.mxu0 %v1231
        %v1250 = vpop.f32.mrf.mxu0
        %v1251 = vadd.f32 0.0, %v1250
        %1252 = vdwg.mxu0
        %1253 = vrot.lane.b32.xlu0 %v820, 64
        %v1254 = vpop.permute.xlu0 %1253
        %v1257 = vsel %vm1034, %v1120, 0
        %1259 = vmatpush.msra.mxu0 0.0
        %1260 = vmatpush.msra.mxu0 0.0
        %1261 = vmatpush.msra.mxu0 0.0
        %1262 = vmatpush.msra.mxu0 0.0
        %1263 = vmatpush.msra.mxu0 0.0
        %1264 = vmatpush.msra.mxu0 0.0
        %1265 = vmatpush.msra.mxu0 0.0
        %1266 = vmatpush.msra.mxu0 0.0
        %1267 = vmatpush.msra.mxu0 0.0
        %1268 = vmatpush.msra.mxu0 0.0
        %1269 = vmatpush.msra.mxu0 0.0
        %1270 = vmatpush.msra.mxu0 0.0
        %1271 = vmatpush.msra.mxu0 0.0
        %1272 = vmatpush.msra.mxu0 0.0
        %1273 = vmatpush.msra.mxu0 0.0
        %1274 = vmatpush.msra.mxu0 %v1254
        %1275 = vmatmul.f32.gmra.mxu0 %v1257
        %v1276 = vpop.f32.mrf.mxu0
        %v1277 = vadd.f32 0.0, %v1276
        %1278 = vdwg.mxu0
        %1279 = vrot.lane.b32.xlu0 %v822, 64
        %v1280 = vpop.permute.xlu0 %1279
        %v1283 = vsel %vm1034, %v1121, 0
        %1285 = vmatpush.msra.mxu0 0.0
        %1286 = vmatpush.msra.mxu0 0.0
        %1287 = vmatpush.msra.mxu0 0.0
        %1288 = vmatpush.msra.mxu0 0.0
        %1289 = vmatpush.msra.mxu0 0.0
        %1290 = vmatpush.msra.mxu0 0.0
        %1291 = vmatpush.msra.mxu0 0.0
        %1292 = vmatpush.msra.mxu0 0.0
        %1293 = vmatpush.msra.mxu0 0.0
        %1294 = vmatpush.msra.mxu0 0.0
        %1295 = vmatpush.msra.mxu0 0.0
        %1296 = vmatpush.msra.mxu0 0.0
        %1297 = vmatpush.msra.mxu0 0.0
        %1298 = vmatpush.msra.mxu0 0.0
        %1299 = vmatpush.msra.mxu0 0.0
        %1300 = vmatpush.msra.mxu0 %v1280
        %1301 = vmatmul.f32.gmra.mxu0 %v1283
        %v1302 = vpop.f32.mrf.mxu0
        %v1303 = vadd.f32 0.0, %v1302
        %1304 = vdwg.mxu0
        %1305 = vrot.lane.b32.xlu0 %v824, 64
        %v1306 = vpop.permute.xlu0 %1305
        %v1309 = vsel %vm1034, %v1122, 0
        %1311 = vmatpush.msra.mxu0 0.0
        %1312 = vmatpush.msra.mxu0 0.0
        %1313 = vmatpush.msra.mxu0 0.0
        %1314 = vmatpush.msra.mxu0 0.0
        %1315 = vmatpush.msra.mxu0 0.0
        %1316 = vmatpush.msra.mxu0 0.0
        %1317 = vmatpush.msra.mxu0 0.0
        %1318 = vmatpush.msra.mxu0 0.0
        %1319 = vmatpush.msra.mxu0 0.0
        %1320 = vmatpush.msra.mxu0 0.0
        %1321 = vmatpush.msra.mxu0 0.0
        %1322 = vmatpush.msra.mxu0 0.0
        %1323 = vmatpush.msra.mxu0 0.0
        %1324 = vmatpush.msra.mxu0 0.0
        %1325 = vmatpush.msra.mxu0 0.0
        %1326 = vmatpush.msra.mxu0 %v1306
        %1327 = vmatmul.f32.gmra.mxu0 %v1309
        %v1328 = vpop.f32.mrf.mxu0
        %v1329 = vadd.f32 0.0, %v1328
        %1330 = vdwg.mxu0
        %1332 = vrot.lane.b32.xlu0 %v1173, 4
        %v1333 = vpop.permute.xlu0 %1332
        %1336 = vrot.lane.b32.xlu0 %v1199, 8
        %v1337 = vpop.permute.xlu0 %1336
        %1340 = vrot.lane.b32.xlu0 %v1225, 12
        %v1341 = vpop.permute.xlu0 %1340
        %1344 = vrot.lane.b32.xlu0 %v1251, 16
        %v1345 = vpop.permute.xlu0 %1344
        %1348 = vrot.lane.b32.xlu0 %v1277, 20
        %v1349 = vpop.permute.xlu0 %1348
        %1352 = vrot.lane.b32.xlu0 %v1303, 24
        %v1353 = vpop.permute.xlu0 %1352
        %1356 = vrot.lane.b32.xlu0 %v1329, 28
        %v1357 = vpop.permute.xlu0 %1356
        %v1359 = vsel %vm827, %v1147, %v1333
        %v1360 = vsel %vm1034, %v1359, %v1337
        %vm1361 = vcmask 97280
        %v1362 = vsel %vm1361, %v1360, %v1341
        %v1363 = vsel %vm479, %v1362, %v1345
        %vm1364 = vcmask 162816
        %v1365 = vsel %vm1364, %v1363, %v1349
        %vm1366 = vcmask 195584
        %v1367 = vsel %vm1366, %v1365, %v1353
        %vm1368 = vcmask 228352
        %v1369 = vsel %vm1368, %v1367, %v1357
        %v1371 = vperm.slane %v539, 0
        %v1374 = vsel %vm643, %v1369, 0
        %1376 = vmatpush.msra.mxu0 0.0
        %1377 = vmatpush.msra.mxu0 0.0
        %1378 = vmatpush.msra.mxu0 0.0
        %1379 = vmatpush.msra.mxu0 0.0
        %1380 = vmatpush.msra.mxu0 0.0
        %1381 = vmatpush.msra.mxu0 0.0
        %1382 = vmatpush.msra.mxu0 0.0
        %1383 = vmatpush.msra.mxu0 0.0
        %1384 = vmatpush.msra.mxu0 0.0
        %1385 = vmatpush.msra.mxu0 0.0
        %1386 = vmatpush.msra.mxu0 0.0
        %1387 = vmatpush.msra.mxu0 0.0
        %1388 = vmatpush.msra.mxu0 %v538
        %1389 = vmatpush.msra.mxu0 %v537
        %1390 = vmatpush.msra.mxu0 %v536
        %1391 = vmatpush.msra.mxu0 %v535
        %1392 = vmatmul.f32.gmra.mxu0 %v1374
        %v1393 = vpop.f32.mrf.mxu0
        %v1394 = vadd.f32 %v1371, %v1393
        %1395 = vdwg.mxu0
        %v1396 = vsel %vm643, %v1394, 0.0
        %1397 = vadd.xlane.f32.xlu0 %v1396
        %v1398 = vpop.xlane.xlu0 %1397
        %v1399 = vmul.f32 %v1398, %v740
        %v1400 = vsub.f32 %v1394, %v1399
        %v1401 = vmul.f32 %v1400, %v1400
        %v1402 = vsel %vm643, %v1401, 0.0
        %1403 = vadd.xlane.f32.xlu0 %v1402
        %v1404 = vpop.xlane.xlu0 %1403
        %v1405 = vmul.f32 %v1404, %v740
        %v1406 = vadd.f32 %v1405, 1e-05
        %v1407 = vrsqrt.pop %v1406
        %v1408 = vmul.f32 %v1407, %v1406
        %v1409 = vmul.f32 %v1408, %v1407
        %v1410 = vmul.f32 0.5, %v1409
        %v1411 = vsub.f32 1.5, %v1410
        %v1412 = vmul.f32 %v1407, %v1411
        %vm1413 = vweird.f32 %v1406
        %vm1414 = vweird.f32 %v1407
        %vm1415 = vmor %vm1413, %vm1414
        %v1416 = vsel %vm1415, %v1407, %v1412
        %v1417 = vmul.f32 %v1400, %v1416
        %v1418 = vmul.f32 %v1417, %v761
        %v1419 = vadd.f32 %v1418, %v765
        %v1421 = vrot.slane %v1419, 1
        %1422 = vrot.lane.b32.xlu0 %v1421, 32
        %v1423 = vpop.permute.xlu0 %1422
        %v1425 = vrot.slane %v1419, 2
        %1426 = vrot.lane.b32.xlu0 %v1425, 64
        %v1427 = vpop.permute.xlu0 %1426
        %v1429 = vrot.slane %v1419, 3
        %1430 = vrot.lane.b32.xlu0 %v1429, 96
        %v1431 = vpop.permute.xlu0 %1430
        %v1433 = vrot.slane %v1419, 4
        %v1435 = vrot.slane %v1419, 5
        %1436 = vrot.lane.b32.xlu0 %v1435, 32
        %v1437 = vpop.permute.xlu0 %1436
        %v1439 = vrot.slane %v1419, 6
        %1440 = vrot.lane.b32.xlu0 %v1439, 64
        %v1441 = vpop.permute.xlu0 %1440
        %v1443 = vrot.slane %v1419, 7
        %1444 = vrot.lane.b32.xlu0 %v1443, 96
        %v1445 = vpop.permute.xlu0 %1444
        %v1447 = vsel %vm643, %v1419, %v1423
        %vm1448 = vcmask 523264
        %v1449 = vsel %vm1448, %v1447, %v1427
        %vm1450 = vcmask 785408
        %v1451 = vsel %vm1450, %v1449, %v1431
        %v1452 = vsel %vm643, %v1433, %v1437
        %v1453 = vsel %vm1448, %v1452, %v1441
        %v1454 = vsel %vm1450, %v1453, %v1445
        %v1455 = vperm.slane %v508, 1
        %v1456 = vmul.f32 %v543, %v1455
        %v1457 = vmul.f32 %v548, %v1455
        %v1458 = vmul.f32 %v553, %v1455
        %v1459 = vmul.f32 %v558, %v1455
        %v1460 = vperm.slane %v501, 1
        %v1461 = vmul.f32 %v567, %v1460
        %v1462 = vmul.f32 %v571, %v1460
        %v1463 = vmul.f32 %v575, %v1460
        %v1464 = vmul.f32 %v579, %v1460
        %v1465 = vadd.f32 %v1456, %v1461
        %v1466 = vadd.f32 %v1457, %v1462
        %v1467 = vadd.f32 %v1458, %v1463
        %v1468 = vadd.f32 %v1459, %v1464
        %v1469 = vperm.slane %v513, 1
        %v1470 = vmul.f32 %v592, %v1469
        %v1471 = vmul.f32 %v596, %v1469
        %v1472 = vmul.f32 %v600, %v1469
        %v1473 = vmul.f32 %v604, %v1469
        %v1474 = vadd.f32 %v1465, %v1470
        %v1475 = vadd.f32 %v1466, %v1471
        %v1476 = vadd.f32 %v1467, %v1472
        %v1477 = vadd.f32 %v1468, %v1473
        %v1478 = vadd.f32 %v1474, %v618
        %v1479 = vadd.f32 %v1475, %v623
        %v1480 = vadd.f32 %v1476, %v628
        %v1481 = vadd.f32 %v1477, %v633
        %v1482 = vmax.f32 %v1478, 0.0
        %v1483 = vmax.f32 %v1479, 0.0
        %v1484 = vmax.f32 %v1480, 0.0
        %v1485 = vmax.f32 %v1481, 0.0
        %1486 = vmatpush.msra.mxu0 0.0
        %1487 = vmatpush.msra.mxu0 0.0
        %1488 = vmatpush.msra.mxu0 0.0
        %1489 = vmatpush.msra.mxu0 0.0
        %1490 = vmatpush.msra.mxu0 0.0
        %1491 = vmatpush.msra.mxu0 0.0
        %1492 = vmatpush.msra.mxu0 0.0
        %1493 = vmatpush.msra.mxu0 0.0
        %1494 = vmatpush.msra.mxu0 0.0
        %1495 = vmatpush.msra.mxu0 0.0
        %1496 = vmatpush.msra.mxu0 0.0
        %1497 = vmatpush.msra.mxu0 0.0
        %1498 = vmatpush.msra.mxu0 %v1485
        %1499 = vmatpush.msra.mxu0 %v1484
        %1500 = vmatpush.msra.mxu0 %v1483
        %1501 = vmatpush.msra.mxu0 %v1482
        %1502 = vmatmul.f32.gmra.mxu0 %v645
        %v1503 = vpop.f32.mrf.mxu0
        %v1504 = vadd.f32 0.0, %v1503
        %1505 = vdwg.mxu0
        %1506 = vmatpush.msra.mxu0 0.0
        %1507 = vmatpush.msra.mxu0 0.0
        %1508 = vmatpush.msra.mxu0 0.0
        %1509 = vmatpush.msra.mxu0 0.0
        %1510 = vmatpush.msra.mxu0 0.0
        %1511 = vmatpush.msra.mxu0 0.0
        %1512 = vmatpush.msra.mxu0 0.0
        %1513 = vmatpush.msra.mxu0 0.0
        %1514 = vmatpush.msra.mxu0 0.0
        %1515 = vmatpush.msra.mxu0 0.0
        %1516 = vmatpush.msra.mxu0 0.0
        %1517 = vmatpush.msra.mxu0 0.0
        %1518 = vmatpush.msra.mxu0 %v1485
        %1519 = vmatpush.msra.mxu0 %v1484
        %1520 = vmatpush.msra.mxu0 %v1483
        %1521 = vmatpush.msra.mxu0 %v1482
        %1522 = vmatmul.f32.gmra.mxu0 %v668
        %v1523 = vpop.f32.mrf.mxu0
        %v1524 = vadd.f32 0.0, %v1523
        %1525 = vdwg.mxu0
        %1526 = vmatpush.msra.mxu0 0.0
        %1527 = vmatpush.msra.mxu0 0.0
        %1528 = vmatpush.msra.mxu0 0.0
        %1529 = vmatpush.msra.mxu0 0.0
        %1530 = vmatpush.msra.mxu0 0.0
        %1531 = vmatpush.msra.mxu0 0.0
        %1532 = vmatpush.msra.mxu0 0.0
        %1533 = vmatpush.msra.mxu0 0.0
        %1534 = vmatpush.msra.mxu0 0.0
        %1535 = vmatpush.msra.mxu0 0.0
        %1536 = vmatpush.msra.mxu0 0.0
        %1537 = vmatpush.msra.mxu0 0.0
        %1538 = vmatpush.msra.mxu0 %v1485
        %1539 = vmatpush.msra.mxu0 %v1484
        %1540 = vmatpush.msra.mxu0 %v1483
        %1541 = vmatpush.msra.mxu0 %v1482
        %1542 = vmatmul.f32.gmra.mxu0 %v691
        %v1543 = vpop.f32.mrf.mxu0
        %v1544 = vadd.f32 0.0, %v1543
        %1545 = vdwg.mxu0
        %1547 = vrot.lane.b32.xlu0 %v1504, 1
        %v1548 = vpop.permute.xlu0 %1547
        %v1550 = vsel %vm507, 0.0, %v1548
        %v1551 = vadd.f32 %v1550, %v1524
        %1553 = vrot.lane.b32.xlu0 %v1544, 127
        %v1554 = vpop.permute.xlu0 %1553
        %v1556 = vsel %vm512, %v1554, 0.0
        %v1557 = vadd.f32 %v1551, %v1556
        %v1558 = vadd.f32 %v1557, %v728
        %v1559 = vsel %vm643, %v1558, 0.0
        %1560 = vadd.xlane.f32.xlu0 %v1559
        %v1561 = vpop.xlane.xlu0 %1560
        %v1562 = vmul.f32 %v1561, %v740
        %v1563 = vsub.f32 %v1558, %v1562
        %v1564 = vmul.f32 %v1563, %v1563
        %v1565 = vsel %vm643, %v1564, 0.0
        %1566 = vadd.xlane.f32.xlu0 %v1565
        %v1567 = vpop.xlane.xlu0 %1566
        %v1568 = vmul.f32 %v1567, %v740
        %v1569 = vadd.f32 %v1568, 1e-05
        %v1570 = vrsqrt.pop %v1569
        %v1571 = vmul.f32 %v1570, %v1569
        %v1572 = vmul.f32 %v1571, %v1570
        %v1573 = vmul.f32 0.5, %v1572
        %v1574 = vsub.f32 1.5, %v1573
        %v1575 = vmul.f32 %v1570, %v1574
        %vm1576 = vweird.f32 %v1569
        %vm1577 = vweird.f32 %v1570
        %vm1578 = vmor %vm1576, %vm1577
        %v1579 = vsel %vm1578, %v1570, %v1575
        %v1580 = vmul.f32 %v1563, %v1579
        %v1581 = vmul.f32 %v1580, %v761
        %v1582 = vadd.f32 %v1581, %v765
        %v1584 = vsel %vm643, %v1582, 0
        %1586 = vmatpush.msra.mxu0 0.0
        %1587 = vmatpush.msra.mxu0 0.0
        %1588 = vmatpush.msra.mxu0 0.0
        %1589 = vmatpush.msra.mxu0 0.0
        %1590 = vmatpush.msra.mxu0 0.0
        %1591 = vmatpush.msra.mxu0 0.0
        %1592 = vmatpush.msra.mxu0 0.0
        %1593 = vmatpush.msra.mxu0 0.0
        %1594 = vmatpush.msra.mxu0 0.0
        %1595 = vmatpush.msra.mxu0 0.0
        %1596 = vmatpush.msra.mxu0 0.0
        %1597 = vmatpush.msra.mxu0 0.0
        %1598 = vmatpush.msra.mxu0 %v533
        %1599 = vmatpush.msra.mxu0 %v532
        %1600 = vmatpush.msra.mxu0 %v531
        %1601 = vmatpush.msra.mxu0 %v530
        %1602 = vmatmul.f32.gmra.mxu0 %v1584
        %v1603 = vpop.f32.mrf.mxu0
        %v1604 = vadd.f32 %v769, %v1603
        %1605 = vdwg.mxu0
        %v1606 = vmul.f32 %v1604, 0.5
        %1608 = vrot.lane.b32.xlu0 %v1606, 124
        %v1609 = vpop.permute.xlu0 %1608
        %1610 = vrot.lane.b32.xlu0 %v1606, 120
        %v1611 = vpop.permute.xlu0 %1610
        %1612 = vrot.lane.b32.xlu0 %v1606, 116
        %v1613 = vpop.permute.xlu0 %1612
        %1614 = vrot.lane.b32.xlu0 %v1606, 112
        %v1615 = vpop.permute.xlu0 %1614
        %1616 = vrot.lane.b32.xlu0 %v1606, 108
        %v1617 = vpop.permute.xlu0 %1616
        %1618 = vrot.lane.b32.xlu0 %v1606, 104
        %v1619 = vpop.permute.xlu0 %1618
        %1620 = vrot.lane.b32.xlu0 %v1606, 100
        %v1621 = vpop.permute.xlu0 %1620
        %1623 = vrot.lane.b32.xlu0 %v1604, 124
        %v1624 = vpop.permute.xlu0 %1623
        %1625 = vrot.lane.b32.xlu0 %v1604, 120
        %v1626 = vpop.permute.xlu0 %1625
        %1627 = vrot.lane.b32.xlu0 %v1604, 116
        %v1628 = vpop.permute.xlu0 %1627
        %1629 = vrot.lane.b32.xlu0 %v1604, 112
        %v1630 = vpop.permute.xlu0 %1629
        %1631 = vrot.lane.b32.xlu0 %v1604, 108
        %v1632 = vpop.permute.xlu0 %1631
        %1633 = vrot.lane.b32.xlu0 %v1604, 104
        %v1634 = vpop.permute.xlu0 %1633
        %1635 = vrot.lane.b32.xlu0 %v1604, 100
        %v1636 = vpop.permute.xlu0 %1635
        %1637 = vrot.lane.b32.xlu0 %v1604, 96
        %v1638 = vpop.permute.xlu0 %1637
        %v1639 = vsel %vm827, %v1606, 0
        %v1641 = vsel %vm827, %v1638, 0
        %1643 = vmatpush.xpose.msra.mxu0 0.0
        %1644 = vmatpush.xpose.msra.mxu0 0.0
        %1645 = vmatpush.xpose.msra.mxu0 0.0
        %1646 = vmatpush.xpose.msra.mxu0 0.0
        %1647 = vmatpush.xpose.msra.mxu0 0.0
        %1648 = vmatpush.xpose.msra.mxu0 0.0
        %1649 = vmatpush.xpose.msra.mxu0 0.0
        %1650 = vmatpush.xpose.msra.mxu0 0.0
        %1651 = vmatpush.xpose.msra.mxu0 0.0
        %1652 = vmatpush.xpose.msra.mxu0 0.0
        %1653 = vmatpush.xpose.msra.mxu0 0.0
        %1654 = vmatpush.xpose.msra.mxu0 0.0
        %1655 = vmatpush.xpose.msra.mxu0 0.0
        %1656 = vmatpush.xpose.msra.mxu0 0.0
        %1657 = vmatpush.xpose.msra.mxu0 0.0
        %1658 = vmatpush.xpose.msra.mxu0 %v1641
        %1659 = vmatmul.f32.gmra.mxu0 %v1639
        %v1660 = vpop.f32.mrf.mxu0
        %v1661 = vadd.f32 0.0, %v1660
        %1662 = vdwg.mxu0
        %1663 = vrot.lane.b32.xlu0 %v1624, 96
        %v1664 = vpop.permute.xlu0 %1663
        %v1665 = vsel %vm827, %v1609, 0
        %v1667 = vsel %vm827, %v1664, 0
        %1669 = vmatpush.xpose.msra.mxu0 0.0
        %1670 = vmatpush.xpose.msra.mxu0 0.0
        %1671 = vmatpush.xpose.msra.mxu0 0.0
        %1672 = vmatpush.xpose.msra.mxu0 0.0
        %1673 = vmatpush.xpose.msra.mxu0 0.0
        %1674 = vmatpush.xpose.msra.mxu0 0.0
        %1675 = vmatpush.xpose.msra.mxu0 0.0
        %1676 = vmatpush.xpose.msra.mxu0 0.0
        %1677 = vmatpush.xpose.msra.mxu0 0.0
        %1678 = vmatpush.xpose.msra.mxu0 0.0
        %1679 = vmatpush.xpose.msra.mxu0 0.0
        %1680 = vmatpush.xpose.msra.mxu0 0.0
        %1681 = vmatpush.xpose.msra.mxu0 0.0
        %1682 = vmatpush.xpose.msra.mxu0 0.0
        %1683 = vmatpush.xpose.msra.mxu0 0.0
        %1684 = vmatpush.xpose.msra.mxu0 %v1667
        %1685 = vmatmul.f32.gmra.mxu0 %v1665
        %v1686 = vpop.f32.mrf.mxu0
        %v1687 = vadd.f32 0.0, %v1686
        %1688 = vdwg.mxu0
        %1689 = vrot.lane.b32.xlu0 %v1626, 96
        %v1690 = vpop.permute.xlu0 %1689
        %v1691 = vsel %vm827, %v1611, 0
        %v1693 = vsel %vm827, %v1690, 0
        %1695 = vmatpush.xpose.msra.mxu0 0.0
        %1696 = vmatpush.xpose.msra.mxu0 0.0
        %1697 = vmatpush.xpose.msra.mxu0 0.0
        %1698 = vmatpush.xpose.msra.mxu0 0.0
        %1699 = vmatpush.xpose.msra.mxu0 0.0
        %1700 = vmatpush.xpose.msra.mxu0 0.0
        %1701 = vmatpush.xpose.msra.mxu0 0.0
        %1702 = vmatpush.xpose.msra.mxu0 0.0
        %1703 = vmatpush.xpose.msra.mxu0 0.0
        %1704 = vmatpush.xpose.msra.mxu0 0.0
        %1705 = vmatpush.xpose.msra.mxu0 0.0
        %1706 = vmatpush.xpose.msra.mxu0 0.0
        %1707 = vmatpush.xpose.msra.mxu0 0.0
        %1708 = vmatpush.xpose.msra.mxu0 0.0
        %1709 = vmatpush.xpose.msra.mxu0 0.0
        %1710 = vmatpush.xpose.msra.mxu0 %v1693
        %1711 = vmatmul.f32.gmra.mxu0 %v1691
        %v1712 = vpop.f32.mrf.mxu0
        %v1713 = vadd.f32 0.0, %v1712
        %1714 = vdwg.mxu0
        %1715 = vrot.lane.b32.xlu0 %v1628, 96
        %v1716 = vpop.permute.xlu0 %1715
        %v1717 = vsel %vm827, %v1613, 0
        %v1719 = vsel %vm827, %v1716, 0
        %1721 = vmatpush.xpose.msra.mxu0 0.0
        %1722 = vmatpush.xpose.msra.mxu0 0.0
        %1723 = vmatpush.xpose.msra.mxu0 0.0
        %1724 = vmatpush.xpose.msra.mxu0 0.0
        %1725 = vmatpush.xpose.msra.mxu0 0.0
        %1726 = vmatpush.xpose.msra.mxu0 0.0
        %1727 = vmatpush.xpose.msra.mxu0 0.0
        %1728 = vmatpush.xpose.msra.mxu0 0.0
        %1729 = vmatpush.xpose.msra.mxu0 0.0
        %1730 = vmatpush.xpose.msra.mxu0 0.0
        %1731 = vmatpush.xpose.msra.mxu0 0.0
        %1732 = vmatpush.xpose.msra.mxu0 0.0
        %1733 = vmatpush.xpose.msra.mxu0 0.0
        %1734 = vmatpush.xpose.msra.mxu0 0.0
        %1735 = vmatpush.xpose.msra.mxu0 0.0
        %1736 = vmatpush.xpose.msra.mxu0 %v1719
        %1737 = vmatmul.f32.gmra.mxu0 %v1717
        %v1738 = vpop.f32.mrf.mxu0
        %v1739 = vadd.f32 0.0, %v1738
        %1740 = vdwg.mxu0
        %1741 = vrot.lane.b32.xlu0 %v1630, 96
        %v1742 = vpop.permute.xlu0 %1741
        %v1743 = vsel %vm827, %v1615, 0
        %v1745 = vsel %vm827, %v1742, 0
        %1747 = vmatpush.xpose.msra.mxu0 0.0
        %1748 = vmatpush.xpose.msra.mxu0 0.0
        %1749 = vmatpush.xpose.msra.mxu0 0.0
        %1750 = vmatpush.xpose.msra.mxu0 0.0
        %1751 = vmatpush.xpose.msra.mxu0 0.0
        %1752 = vmatpush.xpose.msra.mxu0 0.0
        %1753 = vmatpush.xpose.msra.mxu0 0.0
        %1754 = vmatpush.xpose.msra.mxu0 0.0
        %1755 = vmatpush.xpose.msra.mxu0 0.0
        %1756 = vmatpush.xpose.msra.mxu0 0.0
        %1757 = vmatpush.xpose.msra.mxu0 0.0
        %1758 = vmatpush.xpose.msra.mxu0 0.0
        %1759 = vmatpush.xpose.msra.mxu0 0.0
        %1760 = vmatpush.xpose.msra.mxu0 0.0
        %1761 = vmatpush.xpose.msra.mxu0 0.0
        %1762 = vmatpush.xpose.msra.mxu0 %v1745
        %1763 = vmatmul.f32.gmra.mxu0 %v1743
        %v1764 = vpop.f32.mrf.mxu0
        %v1765 = vadd.f32 0.0, %v1764
        %1766 = vdwg.mxu0
        %1767 = vrot.lane.b32.xlu0 %v1632, 96
        %v1768 = vpop.permute.xlu0 %1767
        %v1769 = vsel %vm827, %v1617, 0
        %v1771 = vsel %vm827, %v1768, 0
        %1773 = vmatpush.xpose.msra.mxu0 0.0
        %1774 = vmatpush.xpose.msra.mxu0 0.0
        %1775 = vmatpush.xpose.msra.mxu0 0.0
        %1776 = vmatpush.xpose.msra.mxu0 0.0
        %1777 = vmatpush.xpose.msra.mxu0 0.0
        %1778 = vmatpush.xpose.msra.mxu0 0.0
        %1779 = vmatpush.xpose.msra.mxu0 0.0
        %1780 = vmatpush.xpose.msra.mxu0 0.0
        %1781 = vmatpush.xpose.msra.mxu0 0.0
        %1782 = vmatpush.xpose.msra.mxu0 0.0
        %1783 = vmatpush.xpose.msra.mxu0 0.0
        %1784 = vmatpush.xpose.msra.mxu0 0.0
        %1785 = vmatpush.xpose.msra.mxu0 0.0
        %1786 = vmatpush.xpose.msra.mxu0 0.0
        %1787 = vmatpush.xpose.msra.mxu0 0.0
        %1788 = vmatpush.xpose.msra.mxu0 %v1771
        %1789 = vmatmul.f32.gmra.mxu0 %v1769
        %v1790 = vpop.f32.mrf.mxu0
        %v1791 = vadd.f32 0.0, %v1790
        %1792 = vdwg.mxu0
        %1793 = vrot.lane.b32.xlu0 %v1634, 96
        %v1794 = vpop.permute.xlu0 %1793
        %v1795 = vsel %vm827, %v1619, 0
        %v1797 = vsel %vm827, %v1794, 0
        %1799 = vmatpush.xpose.msra.mxu0 0.0
        %1800 = vmatpush.xpose.msra.mxu0 0.0
        %1801 = vmatpush.xpose.msra.mxu0 0.0
        %1802 = vmatpush.xpose.msra.mxu0 0.0
        %1803 = vmatpush.xpose.msra.mxu0 0.0
        %1804 = vmatpush.xpose.msra.mxu0 0.0
        %1805 = vmatpush.xpose.msra.mxu0 0.0
        %1806 = vmatpush.xpose.msra.mxu0 0.0
        %1807 = vmatpush.xpose.msra.mxu0 0.0
        %1808 = vmatpush.xpose.msra.mxu0 0.0
        %1809 = vmatpush.xpose.msra.mxu0 0.0
        %1810 = vmatpush.xpose.msra.mxu0 0.0
        %1811 = vmatpush.xpose.msra.mxu0 0.0
        %1812 = vmatpush.xpose.msra.mxu0 0.0
        %1813 = vmatpush.xpose.msra.mxu0 0.0
        %1814 = vmatpush.xpose.msra.mxu0 %v1797
        %1815 = vmatmul.f32.gmra.mxu0 %v1795
        %v1816 = vpop.f32.mrf.mxu0
        %v1817 = vadd.f32 0.0, %v1816
        %1818 = vdwg.mxu0
        %1819 = vrot.lane.b32.xlu0 %v1636, 96
        %v1820 = vpop.permute.xlu0 %1819
        %v1821 = vsel %vm827, %v1621, 0
        %v1823 = vsel %vm827, %v1820, 0
        %1825 = vmatpush.xpose.msra.mxu0 0.0
        %1826 = vmatpush.xpose.msra.mxu0 0.0
        %1827 = vmatpush.xpose.msra.mxu0 0.0
        %1828 = vmatpush.xpose.msra.mxu0 0.0
        %1829 = vmatpush.xpose.msra.mxu0 0.0
        %1830 = vmatpush.xpose.msra.mxu0 0.0
        %1831 = vmatpush.xpose.msra.mxu0 0.0
        %1832 = vmatpush.xpose.msra.mxu0 0.0
        %1833 = vmatpush.xpose.msra.mxu0 0.0
        %1834 = vmatpush.xpose.msra.mxu0 0.0
        %1835 = vmatpush.xpose.msra.mxu0 0.0
        %1836 = vmatpush.xpose.msra.mxu0 0.0
        %1837 = vmatpush.xpose.msra.mxu0 0.0
        %1838 = vmatpush.xpose.msra.mxu0 0.0
        %1839 = vmatpush.xpose.msra.mxu0 0.0
        %1840 = vmatpush.xpose.msra.mxu0 %v1823
        %1841 = vmatmul.f32.gmra.mxu0 %v1821
        %v1842 = vpop.f32.mrf.mxu0
        %v1843 = vadd.f32 0.0, %v1842
        %1844 = vdwg.mxu0
        %v1845 = vsel %vm1034, %v1661, -inf
        %1846 = vmax.xlane.f32.xlu0 %v1845
        %v1847 = vpop.xlane.xlu0 %1846
        %v1848 = vsel %vm1034, %v1687, -inf
        %1849 = vmax.xlane.f32.xlu0 %v1848
        %v1850 = vpop.xlane.xlu0 %1849
        %v1851 = vsel %vm1034, %v1713, -inf
        %1852 = vmax.xlane.f32.xlu0 %v1851
        %v1853 = vpop.xlane.xlu0 %1852
        %v1854 = vsel %vm1034, %v1739, -inf
        %1855 = vmax.xlane.f32.xlu0 %v1854
        %v1856 = vpop.xlane.xlu0 %1855
        %v1857 = vsel %vm1034, %v1765, -inf
        %1858 = vmax.xlane.f32.xlu0 %v1857
        %v1859 = vpop.xlane.xlu0 %1858
        %v1860 = vsel %vm1034, %v1791, -inf
        %1861 = vmax.xlane.f32.xlu0 %v1860
        %v1862 = vpop.xlane.xlu0 %1861
        %v1863 = vsel %vm1034, %v1817, -inf
        %1864 = vmax.xlane.f32.xlu0 %v1863
        %v1865 = vpop.xlane.xlu0 %1864
        %v1866 = vsel %vm1034, %v1843, -inf
        %1867 = vmax.xlane.f32.xlu0 %v1866
        %v1868 = vpop.xlane.xlu0 %1867
        %v1869 = vsub.f32 %v1661, %v1847
        %v1870 = vsub.f32 %v1687, %v1850
        %v1871 = vsub.f32 %v1713, %v1853
        %v1872 = vsub.f32 %v1739, %v1856
        %v1873 = vsub.f32 %v1765, %v1859
        %v1874 = vsub.f32 %v1791, %v1862
        %v1875 = vsub.f32 %v1817, %v1865
        %v1876 = vsub.f32 %v1843, %v1868
        %v1877 = vmul.f32 %v1869, 1.442695
        %v1878 = vpow.pop %v1877
        %v1879 = vmul.f32 %v1870, 1.442695
        %v1880 = vpow.pop %v1879
        %v1881 = vmul.f32 %v1871, 1.442695
        %v1882 = vpow.pop %v1881
        %v1883 = vmul.f32 %v1872, 1.442695
        %v1884 = vpow.pop %v1883
        %v1885 = vmul.f32 %v1873, 1.442695
        %v1886 = vpow.pop %v1885
        %v1887 = vmul.f32 %v1874, 1.442695
        %v1888 = vpow.pop %v1887
        %v1889 = vmul.f32 %v1875, 1.442695
        %v1890 = vpow.pop %v1889
        %v1891 = vmul.f32 %v1876, 1.442695
        %v1892 = vpow.pop %v1891
        %v1893 = vsel %vm1034, %v1878, 0.0
        %1894 = vadd.xlane.f32.xlu0 %v1893
        %v1895 = vpop.xlane.xlu0 %1894
        %v1896 = vsel %vm1034, %v1880, 0.0
        %1897 = vadd.xlane.f32.xlu0 %v1896
        %v1898 = vpop.xlane.xlu0 %1897
        %v1899 = vsel %vm1034, %v1882, 0.0
        %1900 = vadd.xlane.f32.xlu0 %v1899
        %v1901 = vpop.xlane.xlu0 %1900
        %v1902 = vsel %vm1034, %v1884, 0.0
        %1903 = vadd.xlane.f32.xlu0 %v1902
        %v1904 = vpop.xlane.xlu0 %1903
        %v1905 = vsel %vm1034, %v1886, 0.0
        %1906 = vadd.xlane.f32.xlu0 %v1905
        %v1907 = vpop.xlane.xlu0 %1906
        %v1908 = vsel %vm1034, %v1888, 0.0
        %1909 = vadd.xlane.f32.xlu0 %v1908
        %v1910 = vpop.xlane.xlu0 %1909
        %v1911 = vsel %vm1034, %v1890, 0.0
        %1912 = vadd.xlane.f32.xlu0 %v1911
        %v1913 = vpop.xlane.xlu0 %1912
        %v1914 = vsel %vm1034, %v1892, 0.0
        %1915 = vadd.xlane.f32.xlu0 %v1914
        %v1916 = vpop.xlane.xlu0 %1915
        %v1917 = vrcp.pop %v1895
        %v1918 = vrcp.pop %v1898
        %v1919 = vrcp.pop %v1901
        %v1920 = vrcp.pop %v1904
        %v1921 = vrcp.pop %v1907
        %v1922 = vrcp.pop %v1910
        %v1923 = vrcp.pop %v1913
        %v1924 = vrcp.pop %v1916
        %v1925 = vmul.f32 %v1878, %v1917
        %v1926 = vmul.f32 %v1880, %v1918
        %v1927 = vmul.f32 %v1882, %v1919
        %v1928 = vmul.f32 %v1884, %v1920
        %v1929 = vmul.f32 %v1886, %v1921
        %v1930 = vmul.f32 %v1888, %v1922
        %v1931 = vmul.f32 %v1890, %v1923
        %v1932 = vmul.f32 %v1892, %v1924
        %1933 = vrot.lane.b32.xlu0 %v1604, 64
        %v1934 = vpop.permute.xlu0 %1933
        %v1937 = vsel %vm1034, %v1925, 0
        %1939 = vmatpush.msra.mxu0 0.0
        %1940 = vmatpush.msra.mxu0 0.0
        %1941 = vmatpush.msra.mxu0 0.0
        %1942 = vmatpush.msra.mxu0 0.0
        %1943 = vmatpush.msra.mxu0 0.0
        %1944 = vmatpush.msra.mxu0 0.0
        %1945 = vmatpush.msra.mxu0 0.0
        %1946 = vmatpush.msra.mxu0 0.0
        %1947 = vmatpush.msra.mxu0 0.0
        %1948 = vmatpush.msra.mxu0 0.0
        %1949 = vmatpush.msra.mxu0 0.0
        %1950 = vmatpush.msra.mxu0 0.0
        %1951 = vmatpush.msra.mxu0 0.0
        %1952 = vmatpush.msra.mxu0 0.0
        %1953 = vmatpush.msra.mxu0 0.0
        %1954 = vmatpush.msra.mxu0 %v1934
        %1955 = vmatmul.f32.gmra.mxu0 %v1937
        %v1956 = vpop.f32.mrf.mxu0
        %v1957 = vadd.f32 0.0, %v1956
        %1958 = vdwg.mxu0
        %1959 = vrot.lane.b32.xlu0 %v1624, 64
        %v1960 = vpop.permute.xlu0 %1959
        %v1963 = vsel %vm1034, %v1926, 0
        %1965 = vmatpush.msra.mxu0 0.0
        %1966 = vmatpush.msra.mxu0 0.0
        %1967 = vmatpush.msra.mxu0 0.0
        %1968 = vmatpush.msra.mxu0 0.0
        %1969 = vmatpush.msra.mxu0 0.0
        %1970 = vmatpush.msra.mxu0 0.0
        %1971 = vmatpush.msra.mxu0 0.0
        %1972 = vmatpush.msra.mxu0 0.0
        %1973 = vmatpush.msra.mxu0 0.0
        %1974 = vmatpush.msra.mxu0 0.0
        %1975 = vmatpush.msra.mxu0 0.0
        %1976 = vmatpush.msra.mxu0 0.0
        %1977 = vmatpush.msra.mxu0 0.0
        %1978 = vmatpush.msra.mxu0 0.0
        %1979 = vmatpush.msra.mxu0 0.0
        %1980 = vmatpush.msra.mxu0 %v1960
        %1981 = vmatmul.f32.gmra.mxu0 %v1963
        %v1982 = vpop.f32.mrf.mxu0
        %v1983 = vadd.f32 0.0, %v1982
        %1984 = vdwg.mxu0
        %1985 = vrot.lane.b32.xlu0 %v1626, 64
        %v1986 = vpop.permute.xlu0 %1985
        %v1989 = vsel %vm1034, %v1927, 0
        %1991 = vmatpush.msra.mxu0 0.0
        %1992 = vmatpush.msra.mxu0 0.0
        %1993 = vmatpush.msra.mxu0 0.0
        %1994 = vmatpush.msra.mxu0 0.0
        %1995 = vmatpush.msra.mxu0 0.0
        %1996 = vmatpush.msra.mxu0 0.0
        %1997 = vmatpush.msra.mxu0 0.0
        %1998 = vmatpush.msra.mxu0 0.0
        %1999 = vmatpush.msra.mxu0 0.0
        %2000 = vmatpush.msra.mxu0 0.0
        %2001 = vmatpush.msra.mxu0 0.0
        %2002 = vmatpush.msra.mxu0 0.0
        %2003 = vmatpush.msra.mxu0 0.0
        %2004 = vmatpush.msra.mxu0 0.0
        %2005 = vmatpush.msra.mxu0 0.0
        %2006 = vmatpush.msra.mxu0 %v1986
        %2007 = vmatmul.f32.gmra.mxu0 %v1989
        %v2008 = vpop.f32.mrf.mxu0
        %v2009 = vadd.f32 0.0, %v2008
        %2010 = vdwg.mxu0
        %2011 = vrot.lane.b32.xlu0 %v1628, 64
        %v2012 = vpop.permute.xlu0 %2011
        %v2015 = vsel %vm1034, %v1928, 0
        %2017 = vmatpush.msra.mxu0 0.0
        %2018 = vmatpush.msra.mxu0 0.0
        %2019 = vmatpush.msra.mxu0 0.0
        %2020 = vmatpush.msra.mxu0 0.0
        %2021 = vmatpush.msra.mxu0 0.0
        %2022 = vmatpush.msra.mxu0 0.0
        %2023 = vmatpush.msra.mxu0 0.0
        %2024 = vmatpush.msra.mxu0 0.0
        %2025 = vmatpush.msra.mxu0 0.0
        %2026 = vmatpush.msra.mxu0 0.0
        %2027 = vmatpush.msra.mxu0 0.0
        %2028 = vmatpush.msra.mxu0 0.0
        %2029 = vmatpush.msra.mxu0 0.0
        %2030 = vmatpush.msra.mxu0 0.0
        %2031 = vmatpush.msra.mxu0 0.0
        %2032 = vmatpush.msra.mxu0 %v2012
        %2033 = vmatmul.f32.gmra.mxu0 %v2015
        %v2034 = vpop.f32.mrf.mxu0
        %v2035 = vadd.f32 0.0, %v2034
        %2036 = vdwg.mxu0
        %2037 = vrot.lane.b32.xlu0 %v1630, 64
        %v2038 = vpop.permute.xlu0 %2037
        %v2041 = vsel %vm1034, %v1929, 0
        %2043 = vmatpush.msra.mxu0 0.0
        %2044 = vmatpush.msra.mxu0 0.0
        %2045 = vmatpush.msra.mxu0 0.0
        %2046 = vmatpush.msra.mxu0 0.0
        %2047 = vmatpush.msra.mxu0 0.0
        %2048 = vmatpush.msra.mxu0 0.0
        %2049 = vmatpush.msra.mxu0 0.0
        %2050 = vmatpush.msra.mxu0 0.0
        %2051 = vmatpush.msra.mxu0 0.0
        %2052 = vmatpush.msra.mxu0 0.0
        %2053 = vmatpush.msra.mxu0 0.0
        %2054 = vmatpush.msra.mxu0 0.0
        %2055 = vmatpush.msra.mxu0 0.0
        %2056 = vmatpush.msra.mxu0 0.0
        %2057 = vmatpush.msra.mxu0 0.0
        %2058 = vmatpush.msra.mxu0 %v2038
        %2059 = vmatmul.f32.gmra.mxu0 %v2041
        %v2060 = vpop.f32.mrf.mxu0
        %v2061 = vadd.f32 0.0, %v2060
        %2062 = vdwg.mxu0
        %2063 = vrot.lane.b32.xlu0 %v1632, 64
        %v2064 = vpop.permute.xlu0 %2063
        %v2067 = vsel %vm1034, %v1930, 0
        %2069 = vmatpush.msra.mxu0 0.0
        %2070 = vmatpush.msra.mxu0 0.0
        %2071 = vmatpush.msra.mxu0 0.0
        %2072 = vmatpush.msra.mxu0 0.0
        %2073 = vmatpush.msra.mxu0 0.0
        %2074 = vmatpush.msra.mxu0 0.0
        %2075 = vmatpush.msra.mxu0 0.0
        %2076 = vmatpush.msra.mxu0 0.0
        %2077 = vmatpush.msra.mxu0 0.0
        %2078 = vmatpush.msra.mxu0 0.0
        %2079 = vmatpush.msra.mxu0 0.0
        %2080 = vmatpush.msra.mxu0 0.0
        %2081 = vmatpush.msra.mxu0 0.0
        %2082 = vmatpush.msra.mxu0 0.0
        %2083 = vmatpush.msra.mxu0 0.0
        %2084 = vmatpush.msra.mxu0 %v2064
        %2085 = vmatmul.f32.gmra.mxu0 %v2067
        %v2086 = vpop.f32.mrf.mxu0
        %v2087 = vadd.f32 0.0, %v2086
        %2088 = vdwg.mxu0
        %2089 = vrot.lane.b32.xlu0 %v1634, 64
        %v2090 = vpop.permute.xlu0 %2089
        %v2093 = vsel %vm1034, %v1931, 0
        %2095 = vmatpush.msra.mxu0 0.0
        %2096 = vmatpush.msra.mxu0 0.0
        %2097 = vmatpush.msra.mxu0 0.0
        %2098 = vmatpush.msra.mxu0 0.0
        %2099 = vmatpush.msra.mxu0 0.0
        %2100 = vmatpush.msra.mxu0 0.0
        %2101 = vmatpush.msra.mxu0 0.0
        %2102 = vmatpush.msra.mxu0 0.0
        %2103 = vmatpush.msra.mxu0 0.0
        %2104 = vmatpush.msra.mxu0 0.0
        %2105 = vmatpush.msra.mxu0 0.0
        %2106 = vmatpush.msra.mxu0 0.0
        %2107 = vmatpush.msra.mxu0 0.0
        %2108 = vmatpush.msra.mxu0 0.0
        %2109 = vmatpush.msra.mxu0 0.0
        %2110 = vmatpush.msra.mxu0 %v2090
        %2111 = vmatmul.f32.gmra.mxu0 %v2093
        %v2112 = vpop.f32.mrf.mxu0
        %v2113 = vadd.f32 0.0, %v2112
        %2114 = vdwg.mxu0
        %2115 = vrot.lane.b32.xlu0 %v1636, 64
        %v2116 = vpop.permute.xlu0 %2115
        %v2119 = vsel %vm1034, %v1932, 0
        %2121 = vmatpush.msra.mxu0 0.0
        %2122 = vmatpush.msra.mxu0 0.0
        %2123 = vmatpush.msra.mxu0 0.0
        %2124 = vmatpush.msra.mxu0 0.0
        %2125 = vmatpush.msra.mxu0 0.0
        %2126 = vmatpush.msra.mxu0 0.0
        %2127 = vmatpush.msra.mxu0 0.0
        %2128 = vmatpush.msra.mxu0 0.0
        %2129 = vmatpush.msra.mxu0 0.0
        %2130 = vmatpush.msra.mxu0 0.0
        %2131 = vmatpush.msra.mxu0 0.0
        %2132 = vmatpush.msra.mxu0 0.0
        %2133 = vmatpush.msra.mxu0 0.0
        %2134 = vmatpush.msra.mxu0 0.0
        %2135 = vmatpush.msra.mxu0 0.0
        %2136 = vmatpush.msra.mxu0 %v2116
        %2137 = vmatmul.f32.gmra.mxu0 %v2119
        %v2138 = vpop.f32.mrf.mxu0
        %v2139 = vadd.f32 0.0, %v2138
        %2140 = vdwg.mxu0
        %2142 = vrot.lane.b32.xlu0 %v1983, 4
        %v2143 = vpop.permute.xlu0 %2142
        %2146 = vrot.lane.b32.xlu0 %v2009, 8
        %v2147 = vpop.permute.xlu0 %2146
        %2150 = vrot.lane.b32.xlu0 %v2035, 12
        %v2151 = vpop.permute.xlu0 %2150
        %2154 = vrot.lane.b32.xlu0 %v2061, 16
        %v2155 = vpop.permute.xlu0 %2154
        %2158 = vrot.lane.b32.xlu0 %v2087, 20
        %v2159 = vpop.permute.xlu0 %2158
        %2162 = vrot.lane.b32.xlu0 %v2113, 24
        %v2163 = vpop.permute.xlu0 %2162
        %2166 = vrot.lane.b32.xlu0 %v2139, 28
        %v2167 = vpop.permute.xlu0 %2166
        %v2169 = vsel %vm827, %v1957, %v2143
        %v2170 = vsel %vm1034, %v2169, %v2147
        %v2171 = vsel %vm1361, %v2170, %v2151
        %v2172 = vsel %vm479, %v2171, %v2155
        %v2173 = vsel %vm1364, %v2172, %v2159
        %v2174 = vsel %vm1366, %v2173, %v2163
        %v2175 = vsel %vm1368, %v2174, %v2167
        %v2177 = vsel %vm643, %v2175, 0
        %2179 = vmatpush.msra.mxu0 0.0
        %2180 = vmatpush.msra.mxu0 0.0
        %2181 = vmatpush.msra.mxu0 0.0
        %2182 = vmatpush.msra.mxu0 0.0
        %2183 = vmatpush.msra.mxu0 0.0
        %2184 = vmatpush.msra.mxu0 0.0
        %2185 = vmatpush.msra.mxu0 0.0
        %2186 = vmatpush.msra.mxu0 0.0
        %2187 = vmatpush.msra.mxu0 0.0
        %2188 = vmatpush.msra.mxu0 0.0
        %2189 = vmatpush.msra.mxu0 0.0
        %2190 = vmatpush.msra.mxu0 0.0
        %2191 = vmatpush.msra.mxu0 %v538
        %2192 = vmatpush.msra.mxu0 %v537
        %2193 = vmatpush.msra.mxu0 %v536
        %2194 = vmatpush.msra.mxu0 %v535
        %2195 = vmatmul.f32.gmra.mxu0 %v2177
        %v2196 = vpop.f32.mrf.mxu0
        %v2197 = vadd.f32 %v1371, %v2196
        %2198 = vdwg.mxu0
        %v2199 = vsel %vm643, %v2197, 0.0
        %2200 = vadd.xlane.f32.xlu0 %v2199
        %v2201 = vpop.xlane.xlu0 %2200
        %v2202 = vmul.f32 %v2201, %v740
        %v2203 = vsub.f32 %v2197, %v2202
        %v2204 = vmul.f32 %v2203, %v2203
        %v2205 = vsel %vm643, %v2204, 0.0
        %2206 = vadd.xlane.f32.xlu0 %v2205
        %v2207 = vpop.xlane.xlu0 %2206
        %v2208 = vmul.f32 %v2207, %v740
        %v2209 = vadd.f32 %v2208, 1e-05
        %v2210 = vrsqrt.pop %v2209
        %v2211 = vmul.f32 %v2210, %v2209
        %v2212 = vmul.f32 %v2211, %v2210
        %v2213 = vmul.f32 0.5, %v2212
        %v2214 = vsub.f32 1.5, %v2213
        %v2215 = vmul.f32 %v2210, %v2214
        %vm2216 = vweird.f32 %v2209
        %vm2217 = vweird.f32 %v2210
        %vm2218 = vmor %vm2216, %vm2217
        %v2219 = vsel %vm2218, %v2210, %v2215
        %v2220 = vmul.f32 %v2203, %v2219
        %v2221 = vmul.f32 %v2220, %v761
        %v2222 = vadd.f32 %v2221, %v765
        %v2224 = vrot.slane %v2222, 1
        %2225 = vrot.lane.b32.xlu0 %v2224, 32
        %v2226 = vpop.permute.xlu0 %2225
        %v2228 = vrot.slane %v2222, 2
        %2229 = vrot.lane.b32.xlu0 %v2228, 64
        %v2230 = vpop.permute.xlu0 %2229
        %v2232 = vrot.slane %v2222, 3
        %2233 = vrot.lane.b32.xlu0 %v2232, 96
        %v2234 = vpop.permute.xlu0 %2233
        %v2236 = vrot.slane %v2222, 4
        %v2238 = vrot.slane %v2222, 5
        %2239 = vrot.lane.b32.xlu0 %v2238, 32
        %v2240 = vpop.permute.xlu0 %2239
        %v2242 = vrot.slane %v2222, 6
        %2243 = vrot.lane.b32.xlu0 %v2242, 64
        %v2244 = vpop.permute.xlu0 %2243
        %v2246 = vrot.slane %v2222, 7
        %2247 = vrot.lane.b32.xlu0 %v2246, 96
        %v2248 = vpop.permute.xlu0 %2247
        %v2250 = vsel %vm643, %v2222, %v2226
        %v2251 = vsel %vm1448, %v2250, %v2230
        %v2252 = vsel %vm1450, %v2251, %v2234
        %v2253 = vsel %vm643, %v2236, %v2240
        %v2254 = vsel %vm1448, %v2253, %v2244
        %v2255 = vsel %vm1450, %v2254, %v2248
        %v2258 = vrot.slane %v2252, 7
        %v2259 = vrot.slane %v2255, 7
        %vm2262 = vcmask 1040384
        %v2263 = vsel %vm2262, %v1451, %v2258
        %v2264 = vsel %vm2262, %v1454, %v2259
        %v2267 = vrot.slane %v2264, 6
        %vm2268 = vcmask 1041408
        %v2269 = vsel %vm2268, %v2263, %v2267
        %2271 = vst [vmem:[%s471] sm:$0xf] %v2269
        %p2272 = scmp.lt.s32.totalorder %s26, 1
        %s2273 = scalar_select %p2272, %s26, 1
        %s2274 = smul.addr %s2273, 2
        %s2275 = smul.addr %s2274, 2
        %s2276 = scalar_lea.vmem %s13, %s2275
        // Predicated region
        $region81: #{temporal_projection.1} parent=71 // pred_check
          %p2277 = pneg %p322
        $region82: #{temporal_projection.1} parent=71 // pred_check_branch
          %2279 = sbr.rel (%p2277) target = $region84
        $region83: #{temporal_projection.1} parent=71 // pred_region
          _
        $region84: #{temporal_projection.1} parent=71 // pred_fallthru
          _
      $region72: #{temporal_projection.1} parent=5 // pred_fallthru
        _
      %p2280 = scmp.le.s32.totalorder 2, %s21
      // Predicated region
      $region85: #{temporal_projection.1} parent=5 // pred_check
        %p2281 = pneg %p2280
      $region86: #{temporal_projection.1} parent=5 // pred_check_branch
        %2283 = sbr.rel (%p2281) target = $region88
      $region87: #{temporal_projection.1} parent=5 // pred_region
        %s2284 = ssub.s32 %s21, 2
        // Predicated region
        $region89: #{temporal_projection.1} parent=87 // pred_check
          %p2285 = pneg %p328
        $region90: #{temporal_projection.1} parent=87 // pred_check_branch
          %2287 = sbr.rel (%p2285) target = $region92
        $region91: #{temporal_projection.1} parent=87 // pred_region
          %p2288 = scmp.lt.s32.totalorder %s27, 1
          %s2289 = scalar_select %p2288, %s27, 1
          %s2290 = smul.addr %s2289, 2
          %s2291 = smul.addr %s2290, 2
          %s2292 = scalar_lea.vmem %s13, %s2291
        $region92: #{temporal_projection.1} parent=87 // pred_fallthru
          _
      $region88: #{temporal_projection.1} parent=5 // pred_fallthru
        _
    $region6: #{temporal_projection.1} parent=1 // loop_footer
      %s25 = sadd.s32 1, %s21
    $region7: #{temporal_projection.1} parent=1 // loop_footer_branch
      %20 = sbr.rel target = $region3
    $region8: #{temporal_projection.1} parent=1 // loop_exit
      _
    %2293 = vsyncpa [#allocation3], 1
    %s2294 = scalar_lea.sflag [#allocation3], 1
    %2295 = vsyncpa %s2294, 1
    %2296 = vsyncpa [#allocation5], 1

</llo_original>
